<compile_context>
chip_gen: v7x
topology: tpu7x:2x2x1
jax: 0.10.0
libtpu: 0.0.40
codegen_flags: <defaults>
</compile_context>

<pallas_src>
import jax
import jax.numpy as jnp
from jax.experimental import pallas as pl
from jax.experimental.pallas import tpu as pltpu


def _lstm_kernel(x_ref, state0_ref, wslab_ref, bslab_ref,
                 logits_ref, state_ref, a_ref):
    """Fused 2-layer LSTM recurrence + Linear head, single invocation.

    x_ref      : ((T+1)*B, Ip) bf16  time-major x, one trailing dummy block, K zero-padded
    state0_ref : (2, B, 2H)    f32   row 0 = [h1_0|h2_0], row 1 = [c1_0|c2_0]
    wslab_ref  : (Ip+4H, 8H)   bf16  rows [0:Ip]=Wx, [Ip:Ip+2H]=W_comb, [Ip+2H:Ip+4H]=Wfc
    bslab_ref  : (2, 8H)       f32   row 0 = fused gate bias, row 1 = fc bias (padded)
    logits_ref : (B, Cp)       f32
    state_ref  : (2, B, 2H)    f32   row 0 = [h1_T|h2_T], row 1 = [c1_T|c2_T]
    a_ref      : ((T+1)*B, 8H) f32   scratch: per-step additive gate terms
    """
    B = state0_ref.shape[1]
    H2 = state0_ref.shape[2]          # 2H (combined two-layer block)
    H = H2 // 2
    H6 = 3 * H2                       # i/f/o region of the fused gate vector
    Ip = x_ref.shape[1]
    T = x_ref.shape[0] // B - 1
    Cp = logits_ref.shape[1]

    # ---- preamble (off the recurrence critical path) ------------------------
    # A[s] holds everything the serial loop must ADD at step s:
    #   layer-0 columns: 0.5-scaled (x_s @ Wih0 + b0) for i/f/o, unscaled for g
    #   layer-1 columns: (0.5-scaled) b1
    wx = wslab_ref[0:Ip, :]
    brow = bslab_ref[0:1, :]
    a_ref[...] = jnp.dot(x_ref[...], wx,
                         preferred_element_type=jnp.float32) + brow

    wcomb = wslab_ref[Ip:Ip + H2, :]          # (2H, 8H), hoisted out of the loop

    h_comb = state0_ref[0]                    # (B, 2H) f32 = [h1 | h2]
    c_comb = state0_ref[1]

    def fused_step(h_in, c_in, s):
        # One MXU push: layer-0 recurrent gates for time s AND layer-1 gates for s-1.
        fused = jnp.dot(h_in.astype(jnp.bfloat16), wcomb,
                        preferred_element_type=jnp.float32)
        z = fused + a_ref[s * B:(s + 1) * B, :]
        act = jnp.tanh(z)                     # single EUP pass over all 8H lanes
        ifo = 0.5 * act[:, :H6] + 0.5         # sigmoid(z) = 0.5*tanh(z/2) + 0.5
        g = act[:, H6:]
        i_c = ifo[:, 0:H2]
        f_c = ifo[:, H2:2 * H2]
        o_c = ifo[:, 2 * H2:3 * H2]
        c_new = f_c * c_in + i_c * g          # joint [layer-0 | layer-1] 64-lane update
        h_new = o_c * jnp.tanh(c_new)
        return h_new, c_new

    # Fused iteration t = -1 .. T-1 (A block index s = t+1): T+1 serial matmuls.
    # Prologue (t = -1): only the layer-0 half of the update is valid.
    h_new, c_new = fused_step(h_comb, c_comb, 0)
    h_comb = jnp.concatenate([h_new[:, :H], h_comb[:, H:]], axis=-1)
    c_comb = jnp.concatenate([c_new[:, :H], c_comb[:, H:]], axis=-1)

    # Steady state: both halves valid (layer-0 @ t+1, layer-1 @ t).
    for t in range(T - 1):
        h_comb, c_comb = fused_step(h_comb, c_comb, t + 1)

    # Epilogue (t = T-1): only the layer-1 half is valid (there is no x[T]).
    h_new, c_new = fused_step(h_comb, c_comb, T)
    h_fin = jnp.concatenate([h_comb[:, :H], h_new[:, H:]], axis=-1)
    c_fin = jnp.concatenate([c_comb[:, :H], c_new[:, H:]], axis=-1)

    # fc on the top-layer last-step output (== x.squeeze()[:, -1]).  The top H
    # rows of the packed fc weight are zero, so [h1|h2] @ Wfc == h2 @ W_fc with
    # no lane slice of the state needed.
    wfc = wslab_ref[Ip + H2:Ip + 2 * H2, 0:Cp]
    bfc = bslab_ref[1:2, 0:Cp]
    logits_ref[...] = jnp.dot(h_fin.astype(jnp.bfloat16), wfc,
                              preferred_element_type=jnp.float32) + bfc
    state_ref[0] = h_fin
    state_ref[1] = c_fin


def prepare_params(params, *, i_pad=128):
    """One-time weight/bias layout prep (hoisted out of the per-call path).

    Builds:
      wslab (bf16): [ Wx (Ip,8H) ; W_comb (2H,8H) ; Wfc (2H,8H) ]
      bslab (f32) : [ fused gate bias (1,8H) ; fc bias padded (1,8H) ]
    Fused gate column layout (width H each): [i0 i1 | f0 f1 | o0 o1 | g0 g1],
    i/f/o columns pre-scaled by 0.5 so one tanh recovers sigmoid and tanh(g).
    """
    I, H4 = params["wih0"].shape
    H = H4 // 4
    C = params["wfc"].shape[1]
    G = 8 * H
    c_pad = ((C + 127) // 128) * 128
    assert I <= i_pad and c_pad <= G

    def gates(w):  # PyTorch gate order along the trailing 4H axis: [i, f, g, o]
        return w[..., 0:H], w[..., H:2 * H], w[..., 2 * H:3 * H], w[..., 3 * H:4 * H]

    def interleave(l0, l1):
        i0, f0, g0, o0 = gates(l0)
        i1, f1, g1, o1 = gates(l1)
        return jnp.concatenate(
            [0.5 * i0, 0.5 * i1, 0.5 * f0, 0.5 * f1, 0.5 * o0, 0.5 * o1, g0, g1],
            axis=-1)

    z_I = jnp.zeros((I, 4 * H), jnp.float32)
    z_H = jnp.zeros((H, 4 * H), jnp.float32)

    # Wx: multiplied by x_t; feeds only the layer-0 gate columns.
    wx = jnp.pad(interleave(params["wih0"], z_I), ((0, i_pad - I), (0, 0)))
    # W_comb: rows 0:H multiplied by h1, rows H:2H by h2 (zero block keeps h2
    # out of the layer-0 gates).
    wcomb = jnp.concatenate([interleave(params["whh0"], params["wih1"]),
                             interleave(z_H, params["whh1"])], axis=0)
    # fc: zero top-H rows so the packed [h1|h2] state multiplies straight through.
    wfc2 = jnp.concatenate([jnp.zeros((H, C), jnp.float32), params["wfc"]], axis=0)
    wfc2 = jnp.pad(wfc2, ((0, 0), (0, G - C)))

    wslab = jnp.concatenate([wx, wcomb, wfc2], axis=0).astype(jnp.bfloat16)

    brow = interleave(params["b0"], params["b1"])            # (1, 8H) f32
    bfc = jnp.pad(params["bfc"], ((0, 0), (0, G - C)))       # (1, 8H) f32
    bslab = jnp.concatenate([brow, bfc], axis=0).astype(jnp.float32)

    return {"wslab": wslab, "bslab": bslab,
            "H": H, "I": I, "C": C, "i_pad": i_pad, "c_pad": c_pad}


def lstm_forward(x, h0, c0, prepped):
    """x: (B, T, I) f32; h0, c0: (2, B, H) f32. Returns (logits, (hn, cn))."""
    B, T, I = x.shape
    H, C = prepped["H"], prepped["C"]
    i_pad, c_pad = prepped["i_pad"], prepped["c_pad"]
    H2 = 2 * H

    # Time-major, flattened, one dummy trailing time block (for the fused
    # epilogue step), contraction dim zero-padded for aligned loads.
    x_tm = jnp.transpose(x, (1, 0, 2)).reshape(T * B, I)
    x_tm = jnp.pad(x_tm, ((0, B), (0, i_pad - I))).astype(jnp.bfloat16)

    # Packed initial state: row 0 = [h1|h2], row 1 = [c1|c2].
    state0 = jnp.stack([jnp.concatenate([h0[0], h0[1]], axis=-1),
                        jnp.concatenate([c0[0], c0[1]], axis=-1)]).astype(jnp.float32)

    vmem = pl.BlockSpec(memory_space=pltpu.MemorySpace.VMEM)
    logits_p, state_out = pl.pallas_call(
        _lstm_kernel,
        in_specs=[vmem] * 4,
        out_specs=(vmem, vmem),
        out_shape=(jax.ShapeDtypeStruct((B, c_pad), jnp.float32),
                   jax.ShapeDtypeStruct((2, B, H2), jnp.float32)),
        scratch_shapes=[pltpu.VMEM(((T + 1) * B, 8 * H), jnp.float32)],
    )(x_tm, state0, prepped["wslab"], prepped["bslab"])

    hn = jnp.stack([state_out[0, :, :H], state_out[0, :, H:]])
    cn = jnp.stack([state_out[1, :, :H], state_out[1, :, H:]])
    return logits_p[:, :C], (hn, cn)


def lstm_reference(x, h0, c0, params):
    """Pure-JAX f32 reference matching PyTorch nn.LSTM + Linear semantics."""
    B, T, I = x.shape

    def cell(x_in, h, c, wih, whh, b):
        gz = x_in @ wih + h @ whh + b
        i, f, g, o = jnp.split(gz, 4, axis=-1)
        i, f, o = jax.nn.sigmoid(i), jax.nn.sigmoid(f), jax.nn.sigmoid(o)
        g = jnp.tanh(g)
        c_new = f * c + i * g
        h_new = o * jnp.tanh(c_new)
        return h_new, c_new

    h1, c1 = h0[0], c0[0]
    h2, c2 = h0[1], c0[1]
    for t in range(T):
        h1, c1 = cell(x[:, t, :], h1, c1,
                      params["wih0"], params["whh0"], params["b0"][0])
        h2, c2 = cell(h1, h2, c2,
                      params["wih1"], params["whh1"], params["b1"][0])
    logits = h2 @ params["wfc"] + params["bfc"][0]
    return logits, (jnp.stack([h1, h2]), jnp.stack([c1, c2]))


def make_params(key, input_size, n_hidden, n_class):
    """Deterministic synthetic parameters (PyTorch-style uniform init, f32)."""
    H = n_hidden
    k = 1.0 / jnp.sqrt(jnp.float32(H))
    keys = jax.random.split(key, 10)
    u = lambda kk, shape: jax.random.uniform(kk, shape, jnp.float32, -k, k)
    # nn.LSTM stores weight_ih_l{k} as (4H, in); transpose for right-multiply.
    params = {
        "wih0": u(keys[0], (4 * H, input_size)).T,
        "whh0": u(keys[1], (4 * H, H)).T,
        "b0": (u(keys[2], (4 * H,)) + u(keys[3], (4 * H,)))[None, :],  # b_ih + b_hh
        "wih1": u(keys[4], (4 * H, H)).T,
        "whh1": u(keys[5], (4 * H, H)).T,
        "b1": (u(keys[6], (4 * H,)) + u(keys[7], (4 * H,)))[None, :],
        "wfc": u(keys[8], (n_class, H)).T,
        "bfc": u(keys[9], (n_class,))[None, :],
    }
    return jax.tree_util.tree_map(lambda a: a.astype(jnp.float32), params)


if __name__ == "__main__":
    # Small shapes consistent with the module (input_size=30, n_layers=2).
    B, T, I = 8, 8, 30
    H, C = 32, 61

    key = jax.random.PRNGKey(0)
    kx, kp = jax.random.split(key)
    x = jax.random.normal(kx, (B, T, I), jnp.float32)
    h0 = jnp.zeros((2, B, H), jnp.float32)   # init_hidden_*: zeros
    c0 = jnp.zeros((2, B, H), jnp.float32)
    params = make_params(kp, I, H, C)

    # TODO(synk): nn.Dropout(p=0) and the never-applied nn.Sigmoid are identities /
    # dead code in forward(), so they are intentionally not materialized.

    prepped = prepare_params(params)         # one-time weight layout prep (hoisted)

    logits, (hn, cn) = lstm_forward(x, h0, c0, prepped)
    jax.block_until_ready((logits, hn, cn))

    ref_logits, (ref_hn, ref_cn) = lstm_reference(x, h0, c0, params)
    assert logits.shape == (B, C)
    assert hn.shape == (2, B, H) and cn.shape == (2, B, H)
    # bf16 matmul operands in the kernel (f32 accumulation) -> slightly looser tol.
    assert jnp.allclose(logits, ref_logits, atol=3e-2, rtol=3e-2)
    assert jnp.allclose(hn, ref_hn, atol=3e-2, rtol=3e-2)
    assert jnp.allclose(cn, ref_cn, atol=3e-2, rtol=3e-2)

    print("KERNEL_OK")
</pallas_src>

<mosaic_0001>
module attributes {stable_mosaic.version = 11 : i64} {
  func.func @_lstm_kernel(%arg0: memref<72x128xbf16, #tpu.memory_space<vmem>>, %arg1: memref<2x8x64xf32, #tpu.memory_space<vmem>>, %arg2: memref<256x256xbf16, #tpu.memory_space<vmem>>, %arg3: memref<2x256xf32, #tpu.memory_space<vmem>>, %arg4: memref<8x128xf32, #tpu.memory_space<vmem>>, %arg5: memref<2x8x64xf32, #tpu.memory_space<vmem>>, %arg6: memref<72x256xf32, #tpu.memory_space<vmem>>) attributes {dimension_semantics = [], scalar_prefetch = 0 : i64, scratch_operands = 1 : i64, tpu.core_type = #tpu.core_type<tc>} {
    %c0 = arith.constant 0 : index
    %c0_0 = arith.constant 0 : index
    %0 = vector.load %arg2[%c0, %c0_0] : memref<256x256xbf16, #tpu.memory_space<vmem>>, vector<128x256xbf16>
    %c0_1 = arith.constant 0 : index
    %c0_2 = arith.constant 0 : index
    %1 = vector.load %arg3[%c0_1, %c0_2] : memref<2x256xf32, #tpu.memory_space<vmem>>, vector<1x256xf32>
    %c0_3 = arith.constant 0 : index
    %c0_4 = arith.constant 0 : index
    %2 = vector.load %arg0[%c0_3, %c0_4] : memref<72x128xbf16, #tpu.memory_space<vmem>>, vector<72x128xbf16>
    %cst = arith.constant dense<0.000000e+00> : vector<72x256xf32>
    %3 = tpu.matmul %2, %0, %cst {dimension_numbers = #tpu.dot_dimension_numbers<[1], [0], [0], [1], [0, 0, 1, 1], [], []>} : vector<72x128xbf16>, vector<128x256xbf16>, vector<72x256xf32> -> vector<72x256xf32>
    %4 = vector.broadcast %1 : vector<1x256xf32> to vector<72x256xf32>
    %5 = arith.addf %3, %4 : vector<72x256xf32>
    %c0_5 = arith.constant 0 : index
    %c0_6 = arith.constant 0 : index
    %6 = vector.load %arg6[%c0_5, %c0_6] : memref<72x256xf32, #tpu.memory_space<vmem>>, vector<72x256xf32>
    tpu.vector_store %arg6[%c0_5, %c0_6], %5 {strides = array<i32>} : memref<72x256xf32, #tpu.memory_space<vmem>>, vector<72x256xf32>,
    %c128 = arith.constant 128 : index
    %c0_7 = arith.constant 0 : index
    %7 = vector.load %arg2[%c128, %c0_7] : memref<256x256xbf16, #tpu.memory_space<vmem>>, vector<64x256xbf16>
    %c0_8 = arith.constant 0 : index
    %c0_9 = arith.constant 0 : index
    %c0_10 = arith.constant 0 : index
    %8 = vector.load %arg1[%c0_8, %c0_9, %c0_10] : memref<2x8x64xf32, #tpu.memory_space<vmem>>, vector<1x8x64xf32>
    %9 = vector.shape_cast %8 : vector<1x8x64xf32> to vector<8x64xf32>
    %c1 = arith.constant 1 : index
    %c0_11 = arith.constant 0 : index
    %c0_12 = arith.constant 0 : index
    %10 = vector.load %arg1[%c1, %c0_11, %c0_12] : memref<2x8x64xf32, #tpu.memory_space<vmem>>, vector<1x8x64xf32>
    %11 = vector.shape_cast %10 : vector<1x8x64xf32> to vector<8x64xf32>
    %12 = arith.truncf %9 : vector<8x64xf32> to vector<8x64xbf16>
    %cst_13 = arith.constant dense<0.000000e+00> : vector<8x256xf32>
    %13 = tpu.matmul %12, %7, %cst_13 {dimension_numbers = #tpu.dot_dimension_numbers<[1], [0], [0], [1], [0, 0, 1, 1], [], []>} : vector<8x64xbf16>, vector<64x256xbf16>, vector<8x256xf32> -> vector<8x256xf32>
    %c0_14 = arith.constant 0 : index
    %c0_15 = arith.constant 0 : index
    %14 = vector.load %arg6[%c0_14, %c0_15] : memref<72x256xf32, #tpu.memory_space<vmem>>, vector<8x256xf32>
    %15 = arith.addf %13, %14 : vector<8x256xf32>
    %16 = math.tanh %15 : vector<8x256xf32>
    %17 = vector.extract_strided_slice %16 {offsets = [0, 0], sizes = [8, 192], strides = [1, 1]} : vector<8x256xf32> to vector<8x192xf32>
    %cst_16 = arith.constant 5.000000e-01 : f32
    %18 = vector.broadcast %cst_16 : f32 to vector<8x192xf32>
    %19 = arith.mulf %18, %17 : vector<8x192xf32>
    %cst_17 = arith.constant 5.000000e-01 : f32
    %20 = vector.broadcast %cst_17 : f32 to vector<8x192xf32>
    %21 = arith.addf %19, %20 : vector<8x192xf32>
    %22 = vector.extract_strided_slice %16 {offsets = [0, 192], sizes = [8, 64], strides = [1, 1]} : vector<8x256xf32> to vector<8x64xf32>
    %23 = vector.extract_strided_slice %21 {offsets = [0, 0], sizes = [8, 64], strides = [1, 1]} : vector<8x192xf32> to vector<8x64xf32>
    %24 = vector.extract_strided_slice %21 {offsets = [0, 64], sizes = [8, 64], strides = [1, 1]} : vector<8x192xf32> to vector<8x64xf32>
    %25 = vector.extract_strided_slice %21 {offsets = [0, 128], sizes = [8, 64], strides = [1, 1]} : vector<8x192xf32> to vector<8x64xf32>
    %26 = arith.mulf %24, %11 : vector<8x64xf32>
    %27 = arith.mulf %23, %22 : vector<8x64xf32>
    %28 = arith.addf %26, %27 : vector<8x64xf32>
    %29 = math.tanh %28 : vector<8x64xf32>
    %30 = arith.mulf %25, %29 : vector<8x64xf32>
    %31 = vector.extract_strided_slice %30 {offsets = [0, 0], sizes = [8, 32], strides = [1, 1]} : vector<8x64xf32> to vector<8x32xf32>
    %32 = vector.extract_strided_slice %9 {offsets = [0, 32], sizes = [8, 32], strides = [1, 1]} : vector<8x64xf32> to vector<8x32xf32>
    %33 = tpu.concatenate %31, %32 in 1 : vector<8x32xf32>, vector<8x32xf32> -> vector<8x64xf32>
    %34 = vector.extract_strided_slice %28 {offsets = [0, 0], sizes = [8, 32], strides = [1, 1]} : vector<8x64xf32> to vector<8x32xf32>
    %35 = vector.extract_strided_slice %11 {offsets = [0, 32], sizes = [8, 32], strides = [1, 1]} : vector<8x64xf32> to vector<8x32xf32>
    %36 = tpu.concatenate %34, %35 in 1 : vector<8x32xf32>, vector<8x32xf32> -> vector<8x64xf32>
    %37 = arith.truncf %33 : vector<8x64xf32> to vector<8x64xbf16>
    %cst_18 = arith.constant dense<0.000000e+00> : vector<8x256xf32>
    %38 = tpu.matmul %37, %7, %cst_18 {dimension_numbers = #tpu.dot_dimension_numbers<[1], [0], [0], [1], [0, 0, 1, 1], [], []>} : vector<8x64xbf16>, vector<64x256xbf16>, vector<8x256xf32> -> vector<8x256xf32>
    %c8 = arith.constant 8 : index
    %c0_19 = arith.constant 0 : index
    %39 = vector.load %arg6[%c8, %c0_19] : memref<72x256xf32, #tpu.memory_space<vmem>>, vector<8x256xf32>
    %40 = arith.addf %38, %39 : vector<8x256xf32>
    %41 = math.tanh %40 : vector<8x256xf32>
    %42 = vector.extract_strided_slice %41 {offsets = [0, 0], sizes = [8, 192], strides = [1, 1]} : vector<8x256xf32> to vector<8x192xf32>
    %cst_20 = arith.constant 5.000000e-01 : f32
    %43 = vector.broadcast %cst_20 : f32 to vector<8x192xf32>
    %44 = arith.mulf %43, %42 : vector<8x192xf32>
    %cst_21 = arith.constant 5.000000e-01 : f32
    %45 = vector.broadcast %cst_21 : f32 to vector<8x192xf32>
    %46 = arith.addf %44, %45 : vector<8x192xf32>
    %47 = vector.extract_strided_slice %41 {offsets = [0, 192], sizes = [8, 64], strides = [1, 1]} : vector<8x256xf32> to vector<8x64xf32>
    %48 = vector.extract_strided_slice %46 {offsets = [0, 0], sizes = [8, 64], strides = [1, 1]} : vector<8x192xf32> to vector<8x64xf32>
    %49 = vector.extract_strided_slice %46 {offsets = [0, 64], sizes = [8, 64], strides = [1, 1]} : vector<8x192xf32> to vector<8x64xf32>
    %50 = vector.extract_strided_slice %46 {offsets = [0, 128], sizes = [8, 64], strides = [1, 1]} : vector<8x192xf32> to vector<8x64xf32>
    %51 = arith.mulf %49, %36 : vector<8x64xf32>
    %52 = arith.mulf %48, %47 : vector<8x64xf32>
    %53 = arith.addf %51, %52 : vector<8x64xf32>
    %54 = math.tanh %53 : vector<8x64xf32>
    %55 = arith.mulf %50, %54 : vector<8x64xf32>
    %56 = arith.truncf %55 : vector<8x64xf32> to vector<8x64xbf16>
    %cst_22 = arith.constant dense<0.000000e+00> : vector<8x256xf32>
    %57 = tpu.matmul %56, %7, %cst_22 {dimension_numbers = #tpu.dot_dimension_numbers<[1], [0], [0], [1], [0, 0, 1, 1], [], []>} : vector<8x64xbf16>, vector<64x256xbf16>, vector<8x256xf32> -> vector<8x256xf32>
    %c16 = arith.constant 16 : index
    %c0_23 = arith.constant 0 : index
    %58 = vector.load %arg6[%c16, %c0_23] : memref<72x256xf32, #tpu.memory_space<vmem>>, vector<8x256xf32>
    %59 = arith.addf %57, %58 : vector<8x256xf32>
    %60 = math.tanh %59 : vector<8x256xf32>
    %61 = vector.extract_strided_slice %60 {offsets = [0, 0], sizes = [8, 192], strides = [1, 1]} : vector<8x256xf32> to vector<8x192xf32>
    %cst_24 = arith.constant 5.000000e-01 : f32
    %62 = vector.broadcast %cst_24 : f32 to vector<8x192xf32>
    %63 = arith.mulf %62, %61 : vector<8x192xf32>
    %cst_25 = arith.constant 5.000000e-01 : f32
    %64 = vector.broadcast %cst_25 : f32 to vector<8x192xf32>
    %65 = arith.addf %63, %64 : vector<8x192xf32>
    %66 = vector.extract_strided_slice %60 {offsets = [0, 192], sizes = [8, 64], strides = [1, 1]} : vector<8x256xf32> to vector<8x64xf32>
    %67 = vector.extract_strided_slice %65 {offsets = [0, 0], sizes = [8, 64], strides = [1, 1]} : vector<8x192xf32> to vector<8x64xf32>
    %68 = vector.extract_strided_slice %65 {offsets = [0, 64], sizes = [8, 64], strides = [1, 1]} : vector<8x192xf32> to vector<8x64xf32>
    %69 = vector.extract_strided_slice %65 {offsets = [0, 128], sizes = [8, 64], strides = [1, 1]} : vector<8x192xf32> to vector<8x64xf32>
    %70 = arith.mulf %68, %53 : vector<8x64xf32>
    %71 = arith.mulf %67, %66 : vector<8x64xf32>
    %72 = arith.addf %70, %71 : vector<8x64xf32>
    %73 = math.tanh %72 : vector<8x64xf32>
    %74 = arith.mulf %69, %73 : vector<8x64xf32>
    %75 = arith.truncf %74 : vector<8x64xf32> to vector<8x64xbf16>
    %cst_26 = arith.constant dense<0.000000e+00> : vector<8x256xf32>
    %76 = tpu.matmul %75, %7, %cst_26 {dimension_numbers = #tpu.dot_dimension_numbers<[1], [0], [0], [1], [0, 0, 1, 1], [], []>} : vector<8x64xbf16>, vector<64x256xbf16>, vector<8x256xf32> -> vector<8x256xf32>
    %c24 = arith.constant 24 : index
    %c0_27 = arith.constant 0 : index
    %77 = vector.load %arg6[%c24, %c0_27] : memref<72x256xf32, #tpu.memory_space<vmem>>, vector<8x256xf32>
    %78 = arith.addf %76, %77 : vector<8x256xf32>
    %79 = math.tanh %78 : vector<8x256xf32>
    %80 = vector.extract_strided_slice %79 {offsets = [0, 0], sizes = [8, 192], strides = [1, 1]} : vector<8x256xf32> to vector<8x192xf32>
    %cst_28 = arith.constant 5.000000e-01 : f32
    %81 = vector.broadcast %cst_28 : f32 to vector<8x192xf32>
    %82 = arith.mulf %81, %80 : vector<8x192xf32>
    %cst_29 = arith.constant 5.000000e-01 : f32
    %83 = vector.broadcast %cst_29 : f32 to vector<8x192xf32>
    %84 = arith.addf %82, %83 : vector<8x192xf32>
    %85 = vector.extract_strided_slice %79 {offsets = [0, 192], sizes = [8, 64], strides = [1, 1]} : vector<8x256xf32> to vector<8x64xf32>
    %86 = vector.extract_strided_slice %84 {offsets = [0, 0], sizes = [8, 64], strides = [1, 1]} : vector<8x192xf32> to vector<8x64xf32>
    %87 = vector.extract_strided_slice %84 {offsets = [0, 64], sizes = [8, 64], strides = [1, 1]} : vector<8x192xf32> to vector<8x64xf32>
    %88 = vector.extract_strided_slice %84 {offsets = [0, 128], sizes = [8, 64], strides = [1, 1]} : vector<8x192xf32> to vector<8x64xf32>
    %89 = arith.mulf %87, %72 : vector<8x64xf32>
    %90 = arith.mulf %86, %85 : vector<8x64xf32>
    %91 = arith.addf %89, %90 : vector<8x64xf32>
    %92 = math.tanh %91 : vector<8x64xf32>
    %93 = arith.mulf %88, %92 : vector<8x64xf32>
    %94 = arith.truncf %93 : vector<8x64xf32> to vector<8x64xbf16>
    %cst_30 = arith.constant dense<0.000000e+00> : vector<8x256xf32>
    %95 = tpu.matmul %94, %7, %cst_30 {dimension_numbers = #tpu.dot_dimension_numbers<[1], [0], [0], [1], [0, 0, 1, 1], [], []>} : vector<8x64xbf16>, vector<64x256xbf16>, vector<8x256xf32> -> vector<8x256xf32>
    %c32 = arith.constant 32 : index
    %c0_31 = arith.constant 0 : index
    %96 = vector.load %arg6[%c32, %c0_31] : memref<72x256xf32, #tpu.memory_space<vmem>>, vector<8x256xf32>
    %97 = arith.addf %95, %96 : vector<8x256xf32>
    %98 = math.tanh %97 : vector<8x256xf32>
    %99 = vector.extract_strided_slice %98 {offsets = [0, 0], sizes = [8, 192], strides = [1, 1]} : vector<8x256xf32> to vector<8x192xf32>
    %cst_32 = arith.constant 5.000000e-01 : f32
    %100 = vector.broadcast %cst_32 : f32 to vector<8x192xf32>
    %101 = arith.mulf %100, %99 : vector<8x192xf32>
    %cst_33 = arith.constant 5.000000e-01 : f32
    %102 = vector.broadcast %cst_33 : f32 to vector<8x192xf32>
    %103 = arith.addf %101, %102 : vector<8x192xf32>
    %104 = vector.extract_strided_slice %98 {offsets = [0, 192], sizes = [8, 64], strides = [1, 1]} : vector<8x256xf32> to vector<8x64xf32>
    %105 = vector.extract_strided_slice %103 {offsets = [0, 0], sizes = [8, 64], strides = [1, 1]} : vector<8x192xf32> to vector<8x64xf32>
    %106 = vector.extract_strided_slice %103 {offsets = [0, 64], sizes = [8, 64], strides = [1, 1]} : vector<8x192xf32> to vector<8x64xf32>
    %107 = vector.extract_strided_slice %103 {offsets = [0, 128], sizes = [8, 64], strides = [1, 1]} : vector<8x192xf32> to vector<8x64xf32>
    %108 = arith.mulf %106, %91 : vector<8x64xf32>
    %109 = arith.mulf %105, %104 : vector<8x64xf32>
    %110 = arith.addf %108, %109 : vector<8x64xf32>
    %111 = math.tanh %110 : vector<8x64xf32>
    %112 = arith.mulf %107, %111 : vector<8x64xf32>
    %113 = arith.truncf %112 : vector<8x64xf32> to vector<8x64xbf16>
    %cst_34 = arith.constant dense<0.000000e+00> : vector<8x256xf32>
    %114 = tpu.matmul %113, %7, %cst_34 {dimension_numbers = #tpu.dot_dimension_numbers<[1], [0], [0], [1], [0, 0, 1, 1], [], []>} : vector<8x64xbf16>, vector<64x256xbf16>, vector<8x256xf32> -> vector<8x256xf32>
    %c40 = arith.constant 40 : index
    %c0_35 = arith.constant 0 : index
    %115 = vector.load %arg6[%c40, %c0_35] : memref<72x256xf32, #tpu.memory_space<vmem>>, vector<8x256xf32>
    %116 = arith.addf %114, %115 : vector<8x256xf32>
    %117 = math.tanh %116 : vector<8x256xf32>
    %118 = vector.extract_strided_slice %117 {offsets = [0, 0], sizes = [8, 192], strides = [1, 1]} : vector<8x256xf32> to vector<8x192xf32>
    %cst_36 = arith.constant 5.000000e-01 : f32
    %119 = vector.broadcast %cst_36 : f32 to vector<8x192xf32>
    %120 = arith.mulf %119, %118 : vector<8x192xf32>
    %cst_37 = arith.constant 5.000000e-01 : f32
    %121 = vector.broadcast %cst_37 : f32 to vector<8x192xf32>
    %122 = arith.addf %120, %121 : vector<8x192xf32>
    %123 = vector.extract_strided_slice %117 {offsets = [0, 192], sizes = [8, 64], strides = [1, 1]} : vector<8x256xf32> to vector<8x64xf32>
    %124 = vector.extract_strided_slice %122 {offsets = [0, 0], sizes = [8, 64], strides = [1, 1]} : vector<8x192xf32> to vector<8x64xf32>
    %125 = vector.extract_strided_slice %122 {offsets = [0, 64], sizes = [8, 64], strides = [1, 1]} : vector<8x192xf32> to vector<8x64xf32>
    %126 = vector.extract_strided_slice %122 {offsets = [0, 128], sizes = [8, 64], strides = [1, 1]} : vector<8x192xf32> to vector<8x64xf32>
    %127 = arith.mulf %125, %110 : vector<8x64xf32>
    %128 = arith.mulf %124, %123 : vector<8x64xf32>
    %129 = arith.addf %127, %128 : vector<8x64xf32>
    %130 = math.tanh %129 : vector<8x64xf32>
    %131 = arith.mulf %126, %130 : vector<8x64xf32>
    %132 = arith.truncf %131 : vector<8x64xf32> to vector<8x64xbf16>
    %cst_38 = arith.constant dense<0.000000e+00> : vector<8x256xf32>
    %133 = tpu.matmul %132, %7, %cst_38 {dimension_numbers = #tpu.dot_dimension_numbers<[1], [0], [0], [1], [0, 0, 1, 1], [], []>} : vector<8x64xbf16>, vector<64x256xbf16>, vector<8x256xf32> -> vector<8x256xf32>
    %c48 = arith.constant 48 : index
    %c0_39 = arith.constant 0 : index
    %134 = vector.load %arg6[%c48, %c0_39] : memref<72x256xf32, #tpu.memory_space<vmem>>, vector<8x256xf32>
    %135 = arith.addf %133, %134 : vector<8x256xf32>
    %136 = math.tanh %135 : vector<8x256xf32>
    %137 = vector.extract_strided_slice %136 {offsets = [0, 0], sizes = [8, 192], strides = [1, 1]} : vector<8x256xf32> to vector<8x192xf32>
    %cst_40 = arith.constant 5.000000e-01 : f32
    %138 = vector.broadcast %cst_40 : f32 to vector<8x192xf32>
    %139 = arith.mulf %138, %137 : vector<8x192xf32>
    %cst_41 = arith.constant 5.000000e-01 : f32
    %140 = vector.broadcast %cst_41 : f32 to vector<8x192xf32>
    %141 = arith.addf %139, %140 : vector<8x192xf32>
    %142 = vector.extract_strided_slice %136 {offsets = [0, 192], sizes = [8, 64], strides = [1, 1]} : vector<8x256xf32> to vector<8x64xf32>
    %143 = vector.extract_strided_slice %141 {offsets = [0, 0], sizes = [8, 64], strides = [1, 1]} : vector<8x192xf32> to vector<8x64xf32>
    %144 = vector.extract_strided_slice %141 {offsets = [0, 64], sizes = [8, 64], strides = [1, 1]} : vector<8x192xf32> to vector<8x64xf32>
    %145 = vector.extract_strided_slice %141 {offsets = [0, 128], sizes = [8, 64], strides = [1, 1]} : vector<8x192xf32> to vector<8x64xf32>
    %146 = arith.mulf %144, %129 : vector<8x64xf32>
    %147 = arith.mulf %143, %142 : vector<8x64xf32>
    %148 = arith.addf %146, %147 : vector<8x64xf32>
    %149 = math.tanh %148 : vector<8x64xf32>
    %150 = arith.mulf %145, %149 : vector<8x64xf32>
    %151 = arith.truncf %150 : vector<8x64xf32> to vector<8x64xbf16>
    %cst_42 = arith.constant dense<0.000000e+00> : vector<8x256xf32>
    %152 = tpu.matmul %151, %7, %cst_42 {dimension_numbers = #tpu.dot_dimension_numbers<[1], [0], [0], [1], [0, 0, 1, 1], [], []>} : vector<8x64xbf16>, vector<64x256xbf16>, vector<8x256xf32> -> vector<8x256xf32>
    %c56 = arith.constant 56 : index
    %c0_43 = arith.constant 0 : index
    %153 = vector.load %arg6[%c56, %c0_43] : memref<72x256xf32, #tpu.memory_space<vmem>>, vector<8x256xf32>
    %154 = arith.addf %152, %153 : vector<8x256xf32>
    %155 = math.tanh %154 : vector<8x256xf32>
    %156 = vector.extract_strided_slice %155 {offsets = [0, 0], sizes = [8, 192], strides = [1, 1]} : vector<8x256xf32> to vector<8x192xf32>
    %cst_44 = arith.constant 5.000000e-01 : f32
    %157 = vector.broadcast %cst_44 : f32 to vector<8x192xf32>
    %158 = arith.mulf %157, %156 : vector<8x192xf32>
    %cst_45 = arith.constant 5.000000e-01 : f32
    %159 = vector.broadcast %cst_45 : f32 to vector<8x192xf32>
    %160 = arith.addf %158, %159 : vector<8x192xf32>
    %161 = vector.extract_strided_slice %155 {offsets = [0, 192], sizes = [8, 64], strides = [1, 1]} : vector<8x256xf32> to vector<8x64xf32>
    %162 = vector.extract_strided_slice %160 {offsets = [0, 0], sizes = [8, 64], strides = [1, 1]} : vector<8x192xf32> to vector<8x64xf32>
    %163 = vector.extract_strided_slice %160 {offsets = [0, 64], sizes = [8, 64], strides = [1, 1]} : vector<8x192xf32> to vector<8x64xf32>
    %164 = vector.extract_strided_slice %160 {offsets = [0, 128], sizes = [8, 64], strides = [1, 1]} : vector<8x192xf32> to vector<8x64xf32>
    %165 = arith.mulf %163, %148 : vector<8x64xf32>
    %166 = arith.mulf %162, %161 : vector<8x64xf32>
    %167 = arith.addf %165, %166 : vector<8x64xf32>
    %168 = math.tanh %167 : vector<8x64xf32>
    %169 = arith.mulf %164, %168 : vector<8x64xf32>
    %170 = arith.truncf %169 : vector<8x64xf32> to vector<8x64xbf16>
    %cst_46 = arith.constant dense<0.000000e+00> : vector<8x256xf32>
    %171 = tpu.matmul %170, %7, %cst_46 {dimension_numbers = #tpu.dot_dimension_numbers<[1], [0], [0], [1], [0, 0, 1, 1], [], []>} : vector<8x64xbf16>, vector<64x256xbf16>, vector<8x256xf32> -> vector<8x256xf32>
    %c64 = arith.constant 64 : index
    %c0_47 = arith.constant 0 : index
    %172 = vector.load %arg6[%c64, %c0_47] : memref<72x256xf32, #tpu.memory_space<vmem>>, vector<8x256xf32>
    %173 = arith.addf %171, %172 : vector<8x256xf32>
    %174 = math.tanh %173 : vector<8x256xf32>
    %175 = vector.extract_strided_slice %174 {offsets = [0, 0], sizes = [8, 192], strides = [1, 1]} : vector<8x256xf32> to vector<8x192xf32>
    %cst_48 = arith.constant 5.000000e-01 : f32
    %176 = vector.broadcast %cst_48 : f32 to vector<8x192xf32>
    %177 = arith.mulf %176, %175 : vector<8x192xf32>
    %cst_49 = arith.constant 5.000000e-01 : f32
    %178 = vector.broadcast %cst_49 : f32 to vector<8x192xf32>
    %179 = arith.addf %177, %178 : vector<8x192xf32>
    %180 = vector.extract_strided_slice %174 {offsets = [0, 192], sizes = [8, 64], strides = [1, 1]} : vector<8x256xf32> to vector<8x64xf32>
    %181 = vector.extract_strided_slice %179 {offsets = [0, 0], sizes = [8, 64], strides = [1, 1]} : vector<8x192xf32> to vector<8x64xf32>
    %182 = vector.extract_strided_slice %179 {offsets = [0, 64], sizes = [8, 64], strides = [1, 1]} : vector<8x192xf32> to vector<8x64xf32>
    %183 = vector.extract_strided_slice %179 {offsets = [0, 128], sizes = [8, 64], strides = [1, 1]} : vector<8x192xf32> to vector<8x64xf32>
    %184 = arith.mulf %182, %167 : vector<8x64xf32>
    %185 = arith.mulf %181, %180 : vector<8x64xf32>
    %186 = arith.addf %184, %185 : vector<8x64xf32>
    %187 = math.tanh %186 : vector<8x64xf32>
    %188 = arith.mulf %183, %187 : vector<8x64xf32>
    %189 = vector.extract_strided_slice %169 {offsets = [0, 0], sizes = [8, 32], strides = [1, 1]} : vector<8x64xf32> to vector<8x32xf32>
    %190 = vector.extract_strided_slice %188 {offsets = [0, 32], sizes = [8, 32], strides = [1, 1]} : vector<8x64xf32> to vector<8x32xf32>
    %191 = tpu.concatenate %189, %190 in 1 : vector<8x32xf32>, vector<8x32xf32> -> vector<8x64xf32>
    %192 = vector.extract_strided_slice %167 {offsets = [0, 0], sizes = [8, 32], strides = [1, 1]} : vector<8x64xf32> to vector<8x32xf32>
    %193 = vector.extract_strided_slice %186 {offsets = [0, 32], sizes = [8, 32], strides = [1, 1]} : vector<8x64xf32> to vector<8x32xf32>
    %194 = tpu.concatenate %192, %193 in 1 : vector<8x32xf32>, vector<8x32xf32> -> vector<8x64xf32>
    %c192 = arith.constant 192 : index
    %c0_50 = arith.constant 0 : index
    %195 = vector.load %arg2[%c192, %c0_50] : memref<256x256xbf16, #tpu.memory_space<vmem>>, vector<64x128xbf16>
    %c1_51 = arith.constant 1 : index
    %c0_52 = arith.constant 0 : index
    %196 = vector.load %arg3[%c1_51, %c0_52] : memref<2x256xf32, #tpu.memory_space<vmem>>, vector<1x128xf32>
    %197 = arith.truncf %191 : vector<8x64xf32> to vector<8x64xbf16>
    %cst_53 = arith.constant dense<0.000000e+00> : vector<8x128xf32>
    %198 = tpu.matmul %197, %195, %cst_53 {dimension_numbers = #tpu.dot_dimension_numbers<[1], [0], [0], [1], [0, 0, 1, 1], [], []>} : vector<8x64xbf16>, vector<64x128xbf16>, vector<8x128xf32> -> vector<8x128xf32>
    %199 = vector.broadcast %196 : vector<1x128xf32> to vector<8x128xf32>
    %200 = arith.addf %198, %199 : vector<8x128xf32>
    %c0_54 = arith.constant 0 : index
    %c0_55 = arith.constant 0 : index
    %201 = vector.load %arg4[%c0_54, %c0_55] : memref<8x128xf32, #tpu.memory_space<vmem>>, vector<8x128xf32>
    tpu.vector_store %arg4[%c0_54, %c0_55], %200 {strides = array<i32>} : memref<8x128xf32, #tpu.memory_space<vmem>>, vector<8x128xf32>,
    %c0_56 = arith.constant 0 : index
    %c0_57 = arith.constant 0 : index
    %c0_58 = arith.constant 0 : index
    %202 = vector.load %arg5[%c0_56, %c0_57, %c0_58] : memref<2x8x64xf32, #tpu.memory_space<vmem>>, vector<1x8x64xf32>
    %203 = vector.shape_cast %202 : vector<1x8x64xf32> to vector<8x64xf32>
    %204 = vector.shape_cast %191 : vector<8x64xf32> to vector<1x8x64xf32>
    tpu.vector_store %arg5[%c0_56, %c0_57, %c0_58], %204 {strides = array<i32>} : memref<2x8x64xf32, #tpu.memory_space<vmem>>, vector<1x8x64xf32>,
    %c1_59 = arith.constant 1 : index
    %c0_60 = arith.constant 0 : index
    %c0_61 = arith.constant 0 : index
    %205 = vector.load %arg5[%c1_59, %c0_60, %c0_61] : memref<2x8x64xf32, #tpu.memory_space<vmem>>, vector<1x8x64xf32>
    %206 = vector.shape_cast %205 : vector<1x8x64xf32> to vector<8x64xf32>
    %207 = vector.shape_cast %194 : vector<8x64xf32> to vector<1x8x64xf32>
    tpu.vector_store %arg5[%c1_59, %c0_60, %c0_61], %207 {strides = array<i32>} : memref<2x8x64xf32, #tpu.memory_space<vmem>>, vector<1x8x64xf32>,
    return
  }
}

</mosaic_0001>

<llo_original>
// kernel: tpu_custom_call.1
$region0: #{tpu_custom_call.1}
  #allocation0 [shape = 'u32[]', space=smem, size = 0x4, offset = 0x4, fixed_abs, tag = 'smem constant byte address 0x4 - core index']
  #allocation1 [shape = 'u32[144,128]{1,0:T(1,128)}', space=vmem, size = 0x12000, scoped, tag = 'internal scratch']
  #allocation2 [shape = 'f32[72,256]{1,0:T(8,128)}', space=vmem, size = 0x12000, scoped, tag = 'scratch operand']
  %s0 = inlined_call_operand.hbm [shape: bf16[72,128], index: 0, kind: input, shape index: {}]
  %s1 = inlined_call_operand.hbm [shape: f32[2,8,64], index: 1, kind: input, shape index: {}]
  %s2 = inlined_call_operand.hbm [shape: bf16[256,256], index: 2, kind: input, shape index: {}]
  %s3 = inlined_call_operand.vmem [shape: f32[2,256], index: 3, kind: input, shape index: {}]
  %s4 = inlined_call_operand.hbm [shape: f32[8,128], index: 4, kind: output, shape index: {0}]
  %s5 = inlined_call_operand.hbm [shape: f32[2,8,64], index: 5, kind: output, shape index: {1}]
  %6 = xla_tuple %s4, %s5
  %s7 = sld [smem:[#allocation0]]
  $region46: #{tpu_custom_call.1} parent=0
    _
  %s9 = ssub.s32 1, %s7
  %s10 = scalar_select 0, %s9, %s7
  $region1: #{tpu_custom_call.1} parent=0
    #allocation3 [shape = 'u8[18432]{0}', space=vmem, size = 0x4800, scoped, tag = 'input window, operand 0, single buffered']
    #allocation4 [shape = 's32[1]{0}', space=sflag, size = 0x4, scoped, tag = 'scoped memory for tpu_custom_call.1']
    #allocation5 [shape = 's32[1]{0}', space=sflag, size = 0x4, scoped, tag = 'scoped memory for tpu_custom_call.1']
    #allocation6 [shape = 'u8[8192]{0}', space=vmem, size = 0x2000, scoped, tag = 'input window, operand 1, single buffered']
    #allocation7 [shape = 's32[1]{0}', space=sflag, size = 0x4, scoped, tag = 'scoped memory for tpu_custom_call.1']
    #allocation8 [shape = 'u8[131072]{0}', space=vmem, size = 0x20000, scoped, tag = 'input window, operand 2, single buffered']
    #allocation9 [shape = 'u8[4096]{0}', space=vmem, size = 0x1000, scoped, tag = 'output window, operand 0, single buffered']
    #allocation10 [shape = 'u8[8192]{0}', space=vmem, size = 0x2000, scoped, tag = 'output window, operand 1, single buffered']
    #allocation11 [shape = 's32[1]{0}', space=sflag, size = 0x4, scoped, tag = 'scoped memory for tpu_custom_call.1']
    %11 = vsyncpa [#allocation4], 0
    %12 = vsyncpa [#allocation7], 0
    %13 = vsyncpa [#allocation5], 0
    %14 = vsyncpa [#allocation11], 0
    // Predicated region
    $region2: #{tpu_custom_call.1} parent=1 // pred_check
      _
    $region3: #{tpu_custom_call.1} parent=1 // pred_check_branch
      %16 = sbr.rel (0) target = $region5
    $region4: #{tpu_custom_call.1} parent=1 // pred_region
      %s18 = ssub.s32 576, 576
      %19 = vsyncadd [#allocation4], %s18
      %s20 = sshll.u32 [#allocation3], 4
      %s21 = int_to_ptr.vmem [resolvable:$true] %s20
      %26 = dma.hbm_to_vmem [thread:$0]  %s0, 576, %s21, [#allocation4], 64, 64, 4
    $region5: #{tpu_custom_call.1} parent=1 // pred_fallthru
      _
    // Predicated region
    $region6: #{tpu_custom_call.1} parent=1 // pred_check
      _
    $region7: #{tpu_custom_call.1} parent=1 // pred_check_branch
      %28 = sbr.rel (0) target = $region9
    $region8: #{tpu_custom_call.1} parent=1 // pred_region
      %s30 = ssub.s32 256, 256
      %31 = vsyncadd [#allocation7], %s30
      %s32 = sshll.u32 [#allocation6], 4
      %s33 = int_to_ptr.vmem [resolvable:$true] %s32
      %38 = dma.hbm_to_vmem [thread:$0]  %s1, 256, %s33, [#allocation7], 128, 128, 8
    $region9: #{tpu_custom_call.1} parent=1 // pred_fallthru
      _
    // Predicated region
    $region10: #{tpu_custom_call.1} parent=1 // pred_check
      _
    $region11: #{tpu_custom_call.1} parent=1 // pred_check_branch
      %40 = sbr.rel (0) target = $region13
    $region12: #{tpu_custom_call.1} parent=1 // pred_region
      %s42 = ssub.s32 4096, 4096
      %43 = vsyncadd [#allocation7], %s42
      %s44 = sshll.u32 [#allocation8], 4
      %s45 = int_to_ptr.vmem [resolvable:$true] %s44
      %50 = dma.hbm_to_vmem [thread:$0]  %s2, 4096, %s45, [#allocation7], 128, 128, 8
    $region13: #{tpu_custom_call.1} parent=1 // pred_fallthru
      _
    // Predicated region
    $region14: #{tpu_custom_call.1} parent=1 // pred_check
      _
    $region15: #{tpu_custom_call.1} parent=1 // pred_check_branch
      %52 = sbr.rel (0) target = $region17
    $region16: #{tpu_custom_call.1} parent=1 // pred_region
      _
    $region17: #{tpu_custom_call.1} parent=1 // pred_fallthru
      _
    // Predicated region
    $region18: #{tpu_custom_call.1} parent=1 // pred_check
      _
    $region19: #{tpu_custom_call.1} parent=1 // pred_check_branch
      %54 = sbr.rel (0) target = $region21
    $region20: #{tpu_custom_call.1} parent=1 // pred_region
      %55 = dma.done [#allocation4], 576
    $region21: #{tpu_custom_call.1} parent=1 // pred_fallthru
      _
    // Predicated region
    $region22: #{tpu_custom_call.1} parent=1 // pred_check
      _
    $region23: #{tpu_custom_call.1} parent=1 // pred_check_branch
      %57 = sbr.rel (0) target = $region25
    $region24: #{tpu_custom_call.1} parent=1 // pred_region
      %58 = dma.done [#allocation7], 256
    $region25: #{tpu_custom_call.1} parent=1 // pred_fallthru
      _
    // Predicated region
    $region26: #{tpu_custom_call.1} parent=1 // pred_check
      _
    $region27: #{tpu_custom_call.1} parent=1 // pred_check_branch
      %60 = sbr.rel (0) target = $region29
    $region28: #{tpu_custom_call.1} parent=1 // pred_region
      %61 = dma.done [#allocation7], 4096
    $region29: #{tpu_custom_call.1} parent=1 // pred_fallthru
      _
    %v63 = vld [vmem:[#allocation8] sm:$0xff]
    %v64 = vld [vmem:[#allocation8 + $0x8] sm:$0xff]
    %v65 = vld [vmem:[#allocation8 + $0x10] sm:$0xff]
    %v66 = vld [vmem:[#allocation8 + $0x18] sm:$0xff]
    %v67 = vld [vmem:[#allocation8 + $0x20] sm:$0xff]
    %v68 = vld [vmem:[#allocation8 + $0x28] sm:$0xff]
    %v69 = vld [vmem:[#allocation8 + $0x30] sm:$0xff]
    %v70 = vld [vmem:[#allocation8 + $0x38] sm:$0xff]
    %v71 = vld [vmem:[#allocation8 + $0x40] sm:$0xff]
    %v72 = vld [vmem:[#allocation8 + $0x48] sm:$0xff]
    %v73 = vld [vmem:[#allocation8 + $0x50] sm:$0xff]
    %v74 = vld [vmem:[#allocation8 + $0x58] sm:$0xff]
    %v75 = vld [vmem:[#allocation8 + $0x60] sm:$0xff]
    %v76 = vld [vmem:[#allocation8 + $0x68] sm:$0xff]
    %v77 = vld [vmem:[#allocation8 + $0x70] sm:$0xff]
    %v78 = vld [vmem:[#allocation8 + $0x78] sm:$0xff]
    %v79 = vld [vmem:[%s3] ss:$2 sm:$0x3]
    %v80 = vld [vmem:[#allocation3] sm:$0xf]
    %v81 = vld [vmem:[#allocation3 + $0x4] sm:$0xf]
    %v82 = vld [vmem:[#allocation3 + $0x8] sm:$0xf]
    %v83 = vld [vmem:[#allocation3 + $0xc] sm:$0xf]
    %v84 = vld [vmem:[#allocation3 + $0x10] sm:$0xf]
    %v85 = vld [vmem:[#allocation3 + $0x14] sm:$0xf]
    %v86 = vld [vmem:[#allocation3 + $0x18] sm:$0xf]
    %v87 = vld [vmem:[#allocation3 + $0x1c] sm:$0xf]
    %v88 = vld [vmem:[#allocation3 + $0x20] sm:$0xf]
    %v90 = vlaneseq
    %v91 = vshrl.u32 %v90, 7
    %v92 = vsub.s32 0, %v91
    %v93 = vrot.slane %v79, %v92
    %v94 = vlaneseq
    %v95 = vshrl.u32 %v94, 7
    %v96 = vsub.s32 1, %v95
    %v97 = vrot.slane %v79, %v96
    %v109 = vunpack.c.l.b16 %v80
    %v110 = vunpack.c.l.b16 %v81
    %v111 = vunpack.c.l.b16 %v82
    %v112 = vunpack.c.l.b16 %v83
    %v113 = vunpack.c.l.b16 %v84
    %v114 = vunpack.c.l.b16 %v85
    %v115 = vunpack.c.l.b16 %v86
    %v116 = vunpack.c.l.b16 %v87
    %v117 = vunpack.c.l.b16 %v88
    %v118 = vpack.c.b16 %v110, %v109
    %v119 = vpack.c.b16 %v112, %v111
    %v120 = vpack.c.b16 %v114, %v113
    %v121 = vpack.c.b16 %v116, %v115
    %v122 = vpack.c.b16 %v117, %v117
    %v144 = vunpack.c.l.b16 %v63
    %v145 = vunpack.c.h.b16 %v63
    %v146 = vunpack.c.l.b16 %v64
    %v147 = vunpack.c.h.b16 %v64
    %v148 = vunpack.c.l.b16 %v65
    %v149 = vunpack.c.h.b16 %v65
    %v150 = vunpack.c.l.b16 %v66
    %v151 = vunpack.c.h.b16 %v66
    %v152 = vunpack.c.l.b16 %v67
    %v153 = vunpack.c.h.b16 %v67
    %v154 = vunpack.c.l.b16 %v68
    %v155 = vunpack.c.h.b16 %v68
    %v156 = vunpack.c.l.b16 %v69
    %v157 = vunpack.c.h.b16 %v69
    %v158 = vunpack.c.l.b16 %v70
    %v159 = vunpack.c.h.b16 %v70
    %v160 = vunpack.c.l.b16 %v71
    %v161 = vunpack.c.h.b16 %v71
    %v162 = vunpack.c.l.b16 %v72
    %v163 = vunpack.c.h.b16 %v72
    %v164 = vunpack.c.l.b16 %v73
    %v165 = vunpack.c.h.b16 %v73
    %v166 = vunpack.c.l.b16 %v74
    %v167 = vunpack.c.h.b16 %v74
    %v168 = vunpack.c.l.b16 %v75
    %v169 = vunpack.c.h.b16 %v75
    %v170 = vunpack.c.l.b16 %v76
    %v171 = vunpack.c.h.b16 %v76
    %v172 = vunpack.c.l.b16 %v77
    %v173 = vunpack.c.h.b16 %v77
    %v174 = vunpack.c.l.b16 %v78
    %v175 = vunpack.c.h.b16 %v78
    %v176 = vpack.c.b16 %v146, %v144
    %v177 = vpack.c.b16 %v147, %v145
    %v178 = vpack.c.b16 %v150, %v148
    %v179 = vpack.c.b16 %v151, %v149
    %v180 = vpack.c.b16 %v154, %v152
    %v181 = vpack.c.b16 %v155, %v153
    %v182 = vpack.c.b16 %v158, %v156
    %v183 = vpack.c.b16 %v159, %v157
    %v184 = vpack.c.b16 %v162, %v160
    %v185 = vpack.c.b16 %v163, %v161
    %v186 = vpack.c.b16 %v166, %v164
    %v187 = vpack.c.b16 %v167, %v165
    %v188 = vpack.c.b16 %v170, %v168
    %v189 = vpack.c.b16 %v171, %v169
    %v190 = vpack.c.b16 %v174, %v172
    %v191 = vpack.c.b16 %v175, %v173
    %208 = vmatprep.subr.bf16.mxu0 %v177
    %209 = vmatpush1.bf16.msra.mxu0 %v176
    %210 = vmatprep.subr.bf16.mxu0 %v179
    %211 = vmatpush1.bf16.msra.mxu0 %v178
    %212 = vmatprep.subr.bf16.mxu0 %v181
    %213 = vmatpush1.bf16.msra.mxu0 %v180
    %214 = vmatprep.subr.bf16.mxu0 %v183
    %215 = vmatpush1.bf16.msra.mxu0 %v182
    %216 = vmatprep.subr.bf16.mxu0 %v185
    %217 = vmatpush1.bf16.msra.mxu0 %v184
    %218 = vmatprep.subr.bf16.mxu0 %v187
    %219 = vmatpush1.bf16.msra.mxu0 %v186
    %220 = vmatprep.subr.bf16.mxu0 %v189
    %221 = vmatpush1.bf16.msra.mxu0 %v188
    %222 = vmatprep.subr.bf16.mxu0 %v191
    %223 = vmatpush1.bf16.msra.mxu0 %v190
    %224 = vmatprep.subr.bf16.mxu0 0
    %225 = vmatpush1.bf16.msra.mxu0 0
    %226 = vmatprep.subr.bf16.mxu0 0
    %227 = vmatpush1.bf16.msra.mxu0 0
    %228 = vmatprep.subr.bf16.mxu0 0
    %229 = vmatpush1.bf16.msra.mxu0 0
    %230 = vmatprep.subr.bf16.mxu0 0
    %231 = vmatpush1.bf16.msra.mxu0 0
    %232 = vmatprep.subr.bf16.mxu0 0
    %233 = vmatpush1.bf16.msra.mxu0 0
    %234 = vmatprep.subr.bf16.mxu0 0
    %235 = vmatpush1.bf16.msra.mxu0 0
    %236 = vmatprep.subr.bf16.mxu0 0
    %237 = vmatpush1.bf16.msra.mxu0 0
    %238 = vmatprep.subr.bf16.mxu0 0
    %239 = vmatpush1.bf16.msra.mxu0 0
    %240 = vmatprep.mubr.bf16.mxu0 0
    %241 = vmatmul.mubr.bf16.gmra.mrb[0].mxu0 %v118
    %v242 = vpop.f32.mrb[0].mxu0
    %v243 = vadd.f32 %v93, %v242
    %v244 = vpop.f32.mrb[0].mxu0
    %v245 = vadd.f32 %v97, %v244
    %v246 = vpop.f32.mrb[0].mxu0
    %v247 = vadd.f32 %v93, %v246
    %v248 = vpop.f32.mrb[0].mxu0
    %v249 = vadd.f32 %v97, %v248
    %250 = vmatprep.mubr.bf16.mxu0 0
    %251 = vmatmul.mubr.bf16.gmra.mrb[0].mxu0 %v119
    %v252 = vpop.f32.mrb[0].mxu0
    %v253 = vadd.f32 %v93, %v252
    %v254 = vpop.f32.mrb[0].mxu0
    %v255 = vadd.f32 %v97, %v254
    %v256 = vpop.f32.mrb[0].mxu0
    %v257 = vadd.f32 %v93, %v256
    %v258 = vpop.f32.mrb[0].mxu0
    %v259 = vadd.f32 %v97, %v258
    %260 = vmatprep.mubr.bf16.mxu0 0
    %261 = vmatmul.mubr.bf16.gmra.mrb[0].mxu0 %v120
    %v262 = vpop.f32.mrb[0].mxu0
    %v263 = vadd.f32 %v93, %v262
    %v264 = vpop.f32.mrb[0].mxu0
    %v265 = vadd.f32 %v97, %v264
    %v266 = vpop.f32.mrb[0].mxu0
    %v267 = vadd.f32 %v93, %v266
    %v268 = vpop.f32.mrb[0].mxu0
    %v269 = vadd.f32 %v97, %v268
    %270 = vmatprep.mubr.bf16.mxu0 0
    %271 = vmatmul.mubr.bf16.gmra.mrb[0].mxu0 %v121
    %v272 = vpop.f32.mrb[0].mxu0
    %v273 = vadd.f32 %v93, %v272
    %v274 = vpop.f32.mrb[0].mxu0
    %v275 = vadd.f32 %v97, %v274
    %v276 = vpop.f32.mrb[0].mxu0
    %v277 = vadd.f32 %v93, %v276
    %v278 = vpop.f32.mrb[0].mxu0
    %v279 = vadd.f32 %v97, %v278
    %280 = vmatprep.mubr.bf16.mxu0 0
    %281 = vmatmul.mubr.bf16.gmra.mrb[0].mxu0 %v122
    %v282 = vpop.f32.mrb[0].mxu0
    %v283 = vadd.f32 %v93, %v282
    %v284 = vpop.f32.mrb[0].mxu0
    %v285 = vadd.f32 %v97, %v284
    %v286 = vpop.f32.mrb[0].mxu0
    %v287 = vpop.f32.mrb[0].mxu0
    %288 = vdwg.mxu0
    %289 = vst [vmem:[#allocation2] sm:$0xff] %v243
    %290 = vst [vmem:[#allocation2 + $0x8] sm:$0xff] %v245
    %291 = vst [vmem:[#allocation2 + $0x10] sm:$0xff] %v247
    %292 = vst [vmem:[#allocation2 + $0x18] sm:$0xff] %v249
    %293 = vst [vmem:[#allocation2 + $0x20] sm:$0xff] %v253
    %294 = vst [vmem:[#allocation2 + $0x28] sm:$0xff] %v255
    %295 = vst [vmem:[#allocation2 + $0x30] sm:$0xff] %v257
    %296 = vst [vmem:[#allocation2 + $0x38] sm:$0xff] %v259
    %297 = vst [vmem:[#allocation2 + $0x40] sm:$0xff] %v263
    %298 = vst [vmem:[#allocation2 + $0x48] sm:$0xff] %v265
    %299 = vst [vmem:[#allocation2 + $0x50] sm:$0xff] %v267
    %300 = vst [vmem:[#allocation2 + $0x58] sm:$0xff] %v269
    %301 = vst [vmem:[#allocation2 + $0x60] sm:$0xff] %v273
    %302 = vst [vmem:[#allocation2 + $0x68] sm:$0xff] %v275
    %303 = vst [vmem:[#allocation2 + $0x70] sm:$0xff] %v277
    %304 = vst [vmem:[#allocation2 + $0x78] sm:$0xff] %v279
    %305 = vst [vmem:[#allocation2 + $0x80] sm:$0xff] %v283
    %306 = vst [vmem:[#allocation2 + $0x88] sm:$0xff] %v285
    %v307 = vld [vmem:[#allocation8 + $0x80] sm:$0xff]
    %v308 = vld [vmem:[#allocation8 + $0x88] sm:$0xff]
    %v309 = vld [vmem:[#allocation8 + $0x90] sm:$0xff]
    %v310 = vld [vmem:[#allocation8 + $0x98] sm:$0xff]
    %v311 = vld [vmem:[#allocation8 + $0xa0] sm:$0xff]
    %v312 = vld [vmem:[#allocation8 + $0xa8] sm:$0xff]
    %v313 = vld [vmem:[#allocation8 + $0xb0] sm:$0xff]
    %v314 = vld [vmem:[#allocation8 + $0xb8] sm:$0xff]
    %v315 = vld [vmem:[#allocation6] sm:$0xff]
    %s316 = scalar_lea.vmem [#allocation6], 8
    %v317 = vld [vmem:[%s316] sm:$0xff]
    %v318 = vpack.c.bf16 %v315, %v315
    %v319 = vld [vmem:[#allocation2] sm:$0xff]
    %v320 = vld [vmem:[#allocation2 + $0x8] sm:$0xff]
    %v329 = vunpack.c.l.b16 %v307
    %v330 = vunpack.c.h.b16 %v307
    %v331 = vunpack.c.l.b16 %v308
    %v332 = vunpack.c.h.b16 %v308
    %v333 = vunpack.c.l.b16 %v309
    %v334 = vunpack.c.h.b16 %v309
    %v335 = vunpack.c.l.b16 %v310
    %v336 = vunpack.c.h.b16 %v310
    %v337 = vunpack.c.l.b16 %v311
    %v338 = vunpack.c.h.b16 %v311
    %v339 = vunpack.c.l.b16 %v312
    %v340 = vunpack.c.h.b16 %v312
    %v341 = vunpack.c.l.b16 %v313
    %v342 = vunpack.c.h.b16 %v313
    %v343 = vunpack.c.l.b16 %v314
    %v344 = vunpack.c.h.b16 %v314
    %v345 = vpack.c.b16 %v331, %v329
    %v346 = vpack.c.b16 %v332, %v330
    %v347 = vpack.c.b16 %v335, %v333
    %v348 = vpack.c.b16 %v336, %v334
    %v349 = vpack.c.b16 %v339, %v337
    %v350 = vpack.c.b16 %v340, %v338
    %v351 = vpack.c.b16 %v343, %v341
    %v352 = vpack.c.b16 %v344, %v342
    %vm361 = vcmask 523264
    %v363 = vsel %vm361, %v318, 0
    %365 = vmatprep.subr.bf16.mxu0 %v346
    %366 = vmatpush1.bf16.msra.mxu0 %v345
    %367 = vmatprep.subr.bf16.mxu0 %v348
    %368 = vmatpush1.bf16.msra.mxu0 %v347
    %369 = vmatprep.subr.bf16.mxu0 %v350
    %370 = vmatpush1.bf16.msra.mxu0 %v349
    %371 = vmatprep.subr.bf16.mxu0 %v352
    %372 = vmatpush1.bf16.msra.mxu0 %v351
    %373 = vmatprep.subr.bf16.mxu0 0
    %374 = vmatpush1.bf16.msra.mxu0 0
    %375 = vmatprep.subr.bf16.mxu0 0
    %376 = vmatpush1.bf16.msra.mxu0 0
    %377 = vmatprep.subr.bf16.mxu0 0
    %378 = vmatpush1.bf16.msra.mxu0 0
    %379 = vmatprep.subr.bf16.mxu0 0
    %380 = vmatpush1.bf16.msra.mxu0 0
    %381 = vmatprep.subr.bf16.mxu0 0
    %382 = vmatpush1.bf16.msra.mxu0 0
    %383 = vmatprep.subr.bf16.mxu0 0
    %384 = vmatpush1.bf16.msra.mxu0 0
    %385 = vmatprep.subr.bf16.mxu0 0
    %386 = vmatpush1.bf16.msra.mxu0 0
    %387 = vmatprep.subr.bf16.mxu0 0
    %388 = vmatpush1.bf16.msra.mxu0 0
    %389 = vmatprep.subr.bf16.mxu0 0
    %390 = vmatpush1.bf16.msra.mxu0 0
    %391 = vmatprep.subr.bf16.mxu0 0
    %392 = vmatpush1.bf16.msra.mxu0 0
    %393 = vmatprep.subr.bf16.mxu0 0
    %394 = vmatpush1.bf16.msra.mxu0 0
    %395 = vmatprep.subr.bf16.mxu0 0
    %396 = vmatpush1.bf16.msra.mxu0 0
    %397 = vmatprep.mubr.bf16.mxu0 0
    %398 = vmatmul.mubr.bf16.gmra.mrb[0].mxu0 %v363
    %v399 = vpop.f32.mrb[0].mxu0
    %v400 = vadd.f32 %v319, %v399
    %v401 = vpop.f32.mrb[0].mxu0
    %v402 = vadd.f32 %v320, %v401
    %v403 = vpop.f32.mrb[0].mxu0
    %v404 = vpop.f32.mrb[0].mxu0
    %405 = vdwg.mxu0
    %v406 = vtanh.pop %v400
    %v407 = vtanh.pop %v402
    %v408 = vmul.f32 %v406, 0.5
    %v409 = vmul.f32 %v407, 0.5
    %v410 = vadd.f32 %v408, 0.5
    %v411 = vadd.f32 %v409, 0.5
    %413 = vrot.lane.b32.xlu0 %v317, 64
    %v414 = vpop.permute.xlu0 %413
    %v416 = vmul.f32 %v410, %v414
    %418 = vrot.lane.b32.xlu0 %v407, 64
    %v419 = vpop.permute.xlu0 %418
    %v421 = vmul.f32 %v410, %v419
    %423 = vrot.lane.b32.xlu0 %v421, 64
    %v424 = vpop.permute.xlu0 %423
    %v426 = vadd.f32 %v416, %v424
    %v427 = vtanh.pop %v426
    %429 = vrot.lane.b32.xlu0 %v427, 64
    %v430 = vpop.permute.xlu0 %429
    %v432 = vmul.f32 %v411, %v430
    %vm433 = vcmask 261120
    %v434 = vsel %vm433, %v432, %v315
    %436 = vrot.lane.b32.xlu0 %v426, 64
    %v437 = vpop.permute.xlu0 %436
    %v439 = vsel %vm433, %v437, %v317
    %v440 = vpack.c.bf16 %v434, %v434
    %v441 = vld [vmem:[#allocation2 + $0x10] sm:$0xff]
    %v442 = vld [vmem:[#allocation2 + $0x18] sm:$0xff]
    %v444 = vsel %vm361, %v440, 0
    %446 = vmatprep.subr.bf16.mxu0 %v346
    %447 = vmatpush1.bf16.msra.mxu0 %v345
    %448 = vmatprep.subr.bf16.mxu0 %v348
    %449 = vmatpush1.bf16.msra.mxu0 %v347
    %450 = vmatprep.subr.bf16.mxu0 %v350
    %451 = vmatpush1.bf16.msra.mxu0 %v349
    %452 = vmatprep.subr.bf16.mxu0 %v352
    %453 = vmatpush1.bf16.msra.mxu0 %v351
    %454 = vmatprep.subr.bf16.mxu0 0
    %455 = vmatpush1.bf16.msra.mxu0 0
    %456 = vmatprep.subr.bf16.mxu0 0
    %457 = vmatpush1.bf16.msra.mxu0 0
    %458 = vmatprep.subr.bf16.mxu0 0
    %459 = vmatpush1.bf16.msra.mxu0 0
    %460 = vmatprep.subr.bf16.mxu0 0
    %461 = vmatpush1.bf16.msra.mxu0 0
    %462 = vmatprep.subr.bf16.mxu0 0
    %463 = vmatpush1.bf16.msra.mxu0 0
    %464 = vmatprep.subr.bf16.mxu0 0
    %465 = vmatpush1.bf16.msra.mxu0 0
    %466 = vmatprep.subr.bf16.mxu0 0
    %467 = vmatpush1.bf16.msra.mxu0 0
    %468 = vmatprep.subr.bf16.mxu0 0
    %469 = vmatpush1.bf16.msra.mxu0 0
    %470 = vmatprep.subr.bf16.mxu0 0
    %471 = vmatpush1.bf16.msra.mxu0 0
    %472 = vmatprep.subr.bf16.mxu0 0
    %473 = vmatpush1.bf16.msra.mxu0 0
    %474 = vmatprep.subr.bf16.mxu0 0
    %475 = vmatpush1.bf16.msra.mxu0 0
    %476 = vmatprep.subr.bf16.mxu0 0
    %477 = vmatpush1.bf16.msra.mxu0 0
    %478 = vmatprep.mubr.bf16.mxu0 0
    %479 = vmatmul.mubr.bf16.gmra.mrb[0].mxu0 %v444
    %v480 = vpop.f32.mrb[0].mxu0
    %v481 = vadd.f32 %v441, %v480
    %v482 = vpop.f32.mrb[0].mxu0
    %v483 = vadd.f32 %v442, %v482
    %v484 = vpop.f32.mrb[0].mxu0
    %v485 = vpop.f32.mrb[0].mxu0
    %486 = vdwg.mxu0
    %v487 = vtanh.pop %v481
    %v488 = vtanh.pop %v483
    %v489 = vmul.f32 %v487, 0.5
    %v490 = vmul.f32 %v488, 0.5
    %v491 = vadd.f32 %v489, 0.5
    %v492 = vadd.f32 %v490, 0.5
    %494 = vrot.lane.b32.xlu0 %v439, 64
    %v495 = vpop.permute.xlu0 %494
    %v497 = vmul.f32 %v491, %v495
    %499 = vrot.lane.b32.xlu0 %v488, 64
    %v500 = vpop.permute.xlu0 %499
    %v502 = vmul.f32 %v491, %v500
    %504 = vrot.lane.b32.xlu0 %v502, 64
    %v505 = vpop.permute.xlu0 %504
    %v507 = vadd.f32 %v497, %v505
    %v508 = vtanh.pop %v507
    %510 = vrot.lane.b32.xlu0 %v508, 64
    %v511 = vpop.permute.xlu0 %510
    %v513 = vmul.f32 %v492, %v511
    %v514 = vpack.c.bf16 %v513, %v513
    %v515 = vld [vmem:[#allocation2 + $0x20] sm:$0xff]
    %v516 = vld [vmem:[#allocation2 + $0x28] sm:$0xff]
    %v518 = vsel %vm361, %v514, 0
    %520 = vmatprep.subr.bf16.mxu0 %v346
    %521 = vmatpush1.bf16.msra.mxu0 %v345
    %522 = vmatprep.subr.bf16.mxu0 %v348
    %523 = vmatpush1.bf16.msra.mxu0 %v347
    %524 = vmatprep.subr.bf16.mxu0 %v350
    %525 = vmatpush1.bf16.msra.mxu0 %v349
    %526 = vmatprep.subr.bf16.mxu0 %v352
    %527 = vmatpush1.bf16.msra.mxu0 %v351
    %528 = vmatprep.subr.bf16.mxu0 0
    %529 = vmatpush1.bf16.msra.mxu0 0
    %530 = vmatprep.subr.bf16.mxu0 0
    %531 = vmatpush1.bf16.msra.mxu0 0
    %532 = vmatprep.subr.bf16.mxu0 0
    %533 = vmatpush1.bf16.msra.mxu0 0
    %534 = vmatprep.subr.bf16.mxu0 0
    %535 = vmatpush1.bf16.msra.mxu0 0
    %536 = vmatprep.subr.bf16.mxu0 0
    %537 = vmatpush1.bf16.msra.mxu0 0
    %538 = vmatprep.subr.bf16.mxu0 0
    %539 = vmatpush1.bf16.msra.mxu0 0
    %540 = vmatprep.subr.bf16.mxu0 0
    %541 = vmatpush1.bf16.msra.mxu0 0
    %542 = vmatprep.subr.bf16.mxu0 0
    %543 = vmatpush1.bf16.msra.mxu0 0
    %544 = vmatprep.subr.bf16.mxu0 0
    %545 = vmatpush1.bf16.msra.mxu0 0
    %546 = vmatprep.subr.bf16.mxu0 0
    %547 = vmatpush1.bf16.msra.mxu0 0
    %548 = vmatprep.subr.bf16.mxu0 0
    %549 = vmatpush1.bf16.msra.mxu0 0
    %550 = vmatprep.subr.bf16.mxu0 0
    %551 = vmatpush1.bf16.msra.mxu0 0
    %552 = vmatprep.mubr.bf16.mxu0 0
    %553 = vmatmul.mubr.bf16.gmra.mrb[0].mxu0 %v518
    %v554 = vpop.f32.mrb[0].mxu0
    %v555 = vadd.f32 %v515, %v554
    %v556 = vpop.f32.mrb[0].mxu0
    %v557 = vadd.f32 %v516, %v556
    %v558 = vpop.f32.mrb[0].mxu0
    %v559 = vpop.f32.mrb[0].mxu0
    %560 = vdwg.mxu0
    %v561 = vtanh.pop %v555
    %v562 = vtanh.pop %v557
    %v563 = vmul.f32 %v561, 0.5
    %v564 = vmul.f32 %v562, 0.5
    %v565 = vadd.f32 %v563, 0.5
    %v566 = vadd.f32 %v564, 0.5
    %v567 = vmul.f32 %v565, %v507
    %569 = vrot.lane.b32.xlu0 %v562, 64
    %v570 = vpop.permute.xlu0 %569
    %v572 = vmul.f32 %v565, %v570
    %574 = vrot.lane.b32.xlu0 %v572, 64
    %v575 = vpop.permute.xlu0 %574
    %v577 = vadd.f32 %v567, %v575
    %v578 = vtanh.pop %v577
    %580 = vrot.lane.b32.xlu0 %v578, 64
    %v581 = vpop.permute.xlu0 %580
    %v583 = vmul.f32 %v566, %v581
    %v584 = vpack.c.bf16 %v583, %v583
    %v585 = vld [vmem:[#allocation2 + $0x30] sm:$0xff]
    %v586 = vld [vmem:[#allocation2 + $0x38] sm:$0xff]
    %v588 = vsel %vm361, %v584, 0
    %590 = vmatprep.subr.bf16.mxu0 %v346
    %591 = vmatpush1.bf16.msra.mxu0 %v345
    %592 = vmatprep.subr.bf16.mxu0 %v348
    %593 = vmatpush1.bf16.msra.mxu0 %v347
    %594 = vmatprep.subr.bf16.mxu0 %v350
    %595 = vmatpush1.bf16.msra.mxu0 %v349
    %596 = vmatprep.subr.bf16.mxu0 %v352
    %597 = vmatpush1.bf16.msra.mxu0 %v351
    %598 = vmatprep.subr.bf16.mxu0 0
    %599 = vmatpush1.bf16.msra.mxu0 0
    %600 = vmatprep.subr.bf16.mxu0 0
    %601 = vmatpush1.bf16.msra.mxu0 0
    %602 = vmatprep.subr.bf16.mxu0 0
    %603 = vmatpush1.bf16.msra.mxu0 0
    %604 = vmatprep.subr.bf16.mxu0 0
    %605 = vmatpush1.bf16.msra.mxu0 0
    %606 = vmatprep.subr.bf16.mxu0 0
    %607 = vmatpush1.bf16.msra.mxu0 0
    %608 = vmatprep.subr.bf16.mxu0 0
    %609 = vmatpush1.bf16.msra.mxu0 0
    %610 = vmatprep.subr.bf16.mxu0 0
    %611 = vmatpush1.bf16.msra.mxu0 0
    %612 = vmatprep.subr.bf16.mxu0 0
    %613 = vmatpush1.bf16.msra.mxu0 0
    %614 = vmatprep.subr.bf16.mxu0 0
    %615 = vmatpush1.bf16.msra.mxu0 0
    %616 = vmatprep.subr.bf16.mxu0 0
    %617 = vmatpush1.bf16.msra.mxu0 0
    %618 = vmatprep.subr.bf16.mxu0 0
    %619 = vmatpush1.bf16.msra.mxu0 0
    %620 = vmatprep.subr.bf16.mxu0 0
    %621 = vmatpush1.bf16.msra.mxu0 0
    %622 = vmatprep.mubr.bf16.mxu0 0
    %623 = vmatmul.mubr.bf16.gmra.mrb[0].mxu0 %v588
    %v624 = vpop.f32.mrb[0].mxu0
    %v625 = vadd.f32 %v585, %v624
    %v626 = vpop.f32.mrb[0].mxu0
    %v627 = vadd.f32 %v586, %v626
    %v628 = vpop.f32.mrb[0].mxu0
    %v629 = vpop.f32.mrb[0].mxu0
    %630 = vdwg.mxu0
    %v631 = vtanh.pop %v625
    %v632 = vtanh.pop %v627
    %v633 = vmul.f32 %v631, 0.5
    %v634 = vmul.f32 %v632, 0.5
    %v635 = vadd.f32 %v633, 0.5
    %v636 = vadd.f32 %v634, 0.5
    %v637 = vmul.f32 %v635, %v577
    %639 = vrot.lane.b32.xlu0 %v632, 64
    %v640 = vpop.permute.xlu0 %639
    %v642 = vmul.f32 %v635, %v640
    %644 = vrot.lane.b32.xlu0 %v642, 64
    %v645 = vpop.permute.xlu0 %644
    %v647 = vadd.f32 %v637, %v645
    %v648 = vtanh.pop %v647
    %650 = vrot.lane.b32.xlu0 %v648, 64
    %v651 = vpop.permute.xlu0 %650
    %v653 = vmul.f32 %v636, %v651
    %v654 = vpack.c.bf16 %v653, %v653
    %v655 = vld [vmem:[#allocation2 + $0x40] sm:$0xff]
    %v656 = vld [vmem:[#allocation2 + $0x48] sm:$0xff]
    %v658 = vsel %vm361, %v654, 0
    %660 = vmatprep.subr.bf16.mxu0 %v346
    %661 = vmatpush1.bf16.msra.mxu0 %v345
    %662 = vmatprep.subr.bf16.mxu0 %v348
    %663 = vmatpush1.bf16.msra.mxu0 %v347
    %664 = vmatprep.subr.bf16.mxu0 %v350
    %665 = vmatpush1.bf16.msra.mxu0 %v349
    %666 = vmatprep.subr.bf16.mxu0 %v352
    %667 = vmatpush1.bf16.msra.mxu0 %v351
    %668 = vmatprep.subr.bf16.mxu0 0
    %669 = vmatpush1.bf16.msra.mxu0 0
    %670 = vmatprep.subr.bf16.mxu0 0
    %671 = vmatpush1.bf16.msra.mxu0 0
    %672 = vmatprep.subr.bf16.mxu0 0
    %673 = vmatpush1.bf16.msra.mxu0 0
    %674 = vmatprep.subr.bf16.mxu0 0
    %675 = vmatpush1.bf16.msra.mxu0 0
    %676 = vmatprep.subr.bf16.mxu0 0
    %677 = vmatpush1.bf16.msra.mxu0 0
    %678 = vmatprep.subr.bf16.mxu0 0
    %679 = vmatpush1.bf16.msra.mxu0 0
    %680 = vmatprep.subr.bf16.mxu0 0
    %681 = vmatpush1.bf16.msra.mxu0 0
    %682 = vmatprep.subr.bf16.mxu0 0
    %683 = vmatpush1.bf16.msra.mxu0 0
    %684 = vmatprep.subr.bf16.mxu0 0
    %685 = vmatpush1.bf16.msra.mxu0 0
    %686 = vmatprep.subr.bf16.mxu0 0
    %687 = vmatpush1.bf16.msra.mxu0 0
    %688 = vmatprep.subr.bf16.mxu0 0
    %689 = vmatpush1.bf16.msra.mxu0 0
    %690 = vmatprep.subr.bf16.mxu0 0
    %691 = vmatpush1.bf16.msra.mxu0 0
    %692 = vmatprep.mubr.bf16.mxu0 0
    %693 = vmatmul.mubr.bf16.gmra.mrb[0].mxu0 %v658
    %v694 = vpop.f32.mrb[0].mxu0
    %v695 = vadd.f32 %v655, %v694
    %v696 = vpop.f32.mrb[0].mxu0
    %v697 = vadd.f32 %v656, %v696
    %v698 = vpop.f32.mrb[0].mxu0
    %v699 = vpop.f32.mrb[0].mxu0
    %700 = vdwg.mxu0
    %v701 = vtanh.pop %v695
    %v702 = vtanh.pop %v697
    %v703 = vmul.f32 %v701, 0.5
    %v704 = vmul.f32 %v702, 0.5
    %v705 = vadd.f32 %v703, 0.5
    %v706 = vadd.f32 %v704, 0.5
    %v707 = vmul.f32 %v705, %v647
    %709 = vrot.lane.b32.xlu0 %v702, 64
    %v710 = vpop.permute.xlu0 %709
    %v712 = vmul.f32 %v705, %v710
    %714 = vrot.lane.b32.xlu0 %v712, 64
    %v715 = vpop.permute.xlu0 %714
    %v717 = vadd.f32 %v707, %v715
    %v718 = vtanh.pop %v717
    %720 = vrot.lane.b32.xlu0 %v718, 64
    %v721 = vpop.permute.xlu0 %720
    %v723 = vmul.f32 %v706, %v721
    %v724 = vpack.c.bf16 %v723, %v723
    %v725 = vld [vmem:[#allocation2 + $0x50] sm:$0xff]
    %v726 = vld [vmem:[#allocation2 + $0x58] sm:$0xff]
    %v728 = vsel %vm361, %v724, 0
    %730 = vmatprep.subr.bf16.mxu0 %v346
    %731 = vmatpush1.bf16.msra.mxu0 %v345
    %732 = vmatprep.subr.bf16.mxu0 %v348
    %733 = vmatpush1.bf16.msra.mxu0 %v347
    %734 = vmatprep.subr.bf16.mxu0 %v350
    %735 = vmatpush1.bf16.msra.mxu0 %v349
    %736 = vmatprep.subr.bf16.mxu0 %v352
    %737 = vmatpush1.bf16.msra.mxu0 %v351
    %738 = vmatprep.subr.bf16.mxu0 0
    %739 = vmatpush1.bf16.msra.mxu0 0
    %740 = vmatprep.subr.bf16.mxu0 0
    %741 = vmatpush1.bf16.msra.mxu0 0
    %742 = vmatprep.subr.bf16.mxu0 0
    %743 = vmatpush1.bf16.msra.mxu0 0
    %744 = vmatprep.subr.bf16.mxu0 0
    %745 = vmatpush1.bf16.msra.mxu0 0
    %746 = vmatprep.subr.bf16.mxu0 0
    %747 = vmatpush1.bf16.msra.mxu0 0
    %748 = vmatprep.subr.bf16.mxu0 0
    %749 = vmatpush1.bf16.msra.mxu0 0
    %750 = vmatprep.subr.bf16.mxu0 0
    %751 = vmatpush1.bf16.msra.mxu0 0
    %752 = vmatprep.subr.bf16.mxu0 0
    %753 = vmatpush1.bf16.msra.mxu0 0
    %754 = vmatprep.subr.bf16.mxu0 0
    %755 = vmatpush1.bf16.msra.mxu0 0
    %756 = vmatprep.subr.bf16.mxu0 0
    %757 = vmatpush1.bf16.msra.mxu0 0
    %758 = vmatprep.subr.bf16.mxu0 0
    %759 = vmatpush1.bf16.msra.mxu0 0
    %760 = vmatprep.subr.bf16.mxu0 0
    %761 = vmatpush1.bf16.msra.mxu0 0
    %762 = vmatprep.mubr.bf16.mxu0 0
    %763 = vmatmul.mubr.bf16.gmra.mrb[0].mxu0 %v728
    %v764 = vpop.f32.mrb[0].mxu0
    %v765 = vadd.f32 %v725, %v764
    %v766 = vpop.f32.mrb[0].mxu0
    %v767 = vadd.f32 %v726, %v766
    %v768 = vpop.f32.mrb[0].mxu0
    %v769 = vpop.f32.mrb[0].mxu0
    %770 = vdwg.mxu0
    %v771 = vtanh.pop %v765
    %v772 = vtanh.pop %v767
    %v773 = vmul.f32 %v771, 0.5
    %v774 = vmul.f32 %v772, 0.5
    %v775 = vadd.f32 %v773, 0.5
    %v776 = vadd.f32 %v774, 0.5
    %v777 = vmul.f32 %v775, %v717
    %779 = vrot.lane.b32.xlu0 %v772, 64
    %v780 = vpop.permute.xlu0 %779
    %v782 = vmul.f32 %v775, %v780
    %784 = vrot.lane.b32.xlu0 %v782, 64
    %v785 = vpop.permute.xlu0 %784
    %v787 = vadd.f32 %v777, %v785
    %v788 = vtanh.pop %v787
    %790 = vrot.lane.b32.xlu0 %v788, 64
    %v791 = vpop.permute.xlu0 %790
    %v793 = vmul.f32 %v776, %v791
    %v794 = vpack.c.bf16 %v793, %v793
    %v795 = vld [vmem:[#allocation2 + $0x60] sm:$0xff]
    %v796 = vld [vmem:[#allocation2 + $0x68] sm:$0xff]
    %v798 = vsel %vm361, %v794, 0
    %800 = vmatprep.subr.bf16.mxu0 %v346
    %801 = vmatpush1.bf16.msra.mxu0 %v345
    %802 = vmatprep.subr.bf16.mxu0 %v348
    %803 = vmatpush1.bf16.msra.mxu0 %v347
    %804 = vmatprep.subr.bf16.mxu0 %v350
    %805 = vmatpush1.bf16.msra.mxu0 %v349
    %806 = vmatprep.subr.bf16.mxu0 %v352
    %807 = vmatpush1.bf16.msra.mxu0 %v351
    %808 = vmatprep.subr.bf16.mxu0 0
    %809 = vmatpush1.bf16.msra.mxu0 0
    %810 = vmatprep.subr.bf16.mxu0 0
    %811 = vmatpush1.bf16.msra.mxu0 0
    %812 = vmatprep.subr.bf16.mxu0 0
    %813 = vmatpush1.bf16.msra.mxu0 0
    %814 = vmatprep.subr.bf16.mxu0 0
    %815 = vmatpush1.bf16.msra.mxu0 0
    %816 = vmatprep.subr.bf16.mxu0 0
    %817 = vmatpush1.bf16.msra.mxu0 0
    %818 = vmatprep.subr.bf16.mxu0 0
    %819 = vmatpush1.bf16.msra.mxu0 0
    %820 = vmatprep.subr.bf16.mxu0 0
    %821 = vmatpush1.bf16.msra.mxu0 0
    %822 = vmatprep.subr.bf16.mxu0 0
    %823 = vmatpush1.bf16.msra.mxu0 0
    %824 = vmatprep.subr.bf16.mxu0 0
    %825 = vmatpush1.bf16.msra.mxu0 0
    %826 = vmatprep.subr.bf16.mxu0 0
    %827 = vmatpush1.bf16.msra.mxu0 0
    %828 = vmatprep.subr.bf16.mxu0 0
    %829 = vmatpush1.bf16.msra.mxu0 0
    %830 = vmatprep.subr.bf16.mxu0 0
    %831 = vmatpush1.bf16.msra.mxu0 0
    %832 = vmatprep.mubr.bf16.mxu0 0
    %833 = vmatmul.mubr.bf16.gmra.mrb[0].mxu0 %v798
    %v834 = vpop.f32.mrb[0].mxu0
    %v835 = vadd.f32 %v795, %v834
    %v836 = vpop.f32.mrb[0].mxu0
    %v837 = vadd.f32 %v796, %v836
    %v838 = vpop.f32.mrb[0].mxu0
    %v839 = vpop.f32.mrb[0].mxu0
    %840 = vdwg.mxu0
    %v841 = vtanh.pop %v835
    %v842 = vtanh.pop %v837
    %v843 = vmul.f32 %v841, 0.5
    %v844 = vmul.f32 %v842, 0.5
    %v845 = vadd.f32 %v843, 0.5
    %v846 = vadd.f32 %v844, 0.5
    %v847 = vmul.f32 %v845, %v787
    %849 = vrot.lane.b32.xlu0 %v842, 64
    %v850 = vpop.permute.xlu0 %849
    %v852 = vmul.f32 %v845, %v850
    %854 = vrot.lane.b32.xlu0 %v852, 64
    %v855 = vpop.permute.xlu0 %854
    %v857 = vadd.f32 %v847, %v855
    %v858 = vtanh.pop %v857
    %860 = vrot.lane.b32.xlu0 %v858, 64
    %v861 = vpop.permute.xlu0 %860
    %v863 = vmul.f32 %v846, %v861
    %v864 = vpack.c.bf16 %v863, %v863
    %v865 = vld [vmem:[#allocation2 + $0x70] sm:$0xff]
    %v866 = vld [vmem:[#allocation2 + $0x78] sm:$0xff]
    %v868 = vsel %vm361, %v864, 0
    %870 = vmatprep.subr.bf16.mxu0 %v346
    %871 = vmatpush1.bf16.msra.mxu0 %v345
    %872 = vmatprep.subr.bf16.mxu0 %v348
    %873 = vmatpush1.bf16.msra.mxu0 %v347
    %874 = vmatprep.subr.bf16.mxu0 %v350
    %875 = vmatpush1.bf16.msra.mxu0 %v349
    %876 = vmatprep.subr.bf16.mxu0 %v352
    %877 = vmatpush1.bf16.msra.mxu0 %v351
    %878 = vmatprep.subr.bf16.mxu0 0
    %879 = vmatpush1.bf16.msra.mxu0 0
    %880 = vmatprep.subr.bf16.mxu0 0
    %881 = vmatpush1.bf16.msra.mxu0 0
    %882 = vmatprep.subr.bf16.mxu0 0
    %883 = vmatpush1.bf16.msra.mxu0 0
    %884 = vmatprep.subr.bf16.mxu0 0
    %885 = vmatpush1.bf16.msra.mxu0 0
    %886 = vmatprep.subr.bf16.mxu0 0
    %887 = vmatpush1.bf16.msra.mxu0 0
    %888 = vmatprep.subr.bf16.mxu0 0
    %889 = vmatpush1.bf16.msra.mxu0 0
    %890 = vmatprep.subr.bf16.mxu0 0
    %891 = vmatpush1.bf16.msra.mxu0 0
    %892 = vmatprep.subr.bf16.mxu0 0
    %893 = vmatpush1.bf16.msra.mxu0 0
    %894 = vmatprep.subr.bf16.mxu0 0
    %895 = vmatpush1.bf16.msra.mxu0 0
    %896 = vmatprep.subr.bf16.mxu0 0
    %897 = vmatpush1.bf16.msra.mxu0 0
    %898 = vmatprep.subr.bf16.mxu0 0
    %899 = vmatpush1.bf16.msra.mxu0 0
    %900 = vmatprep.subr.bf16.mxu0 0
    %901 = vmatpush1.bf16.msra.mxu0 0
    %902 = vmatprep.mubr.bf16.mxu0 0
    %903 = vmatmul.mubr.bf16.gmra.mrb[0].mxu0 %v868
    %v904 = vpop.f32.mrb[0].mxu0
    %v905 = vadd.f32 %v865, %v904
    %v906 = vpop.f32.mrb[0].mxu0
    %v907 = vadd.f32 %v866, %v906
    %v908 = vpop.f32.mrb[0].mxu0
    %v909 = vpop.f32.mrb[0].mxu0
    %910 = vdwg.mxu0
    %v911 = vtanh.pop %v905
    %v912 = vtanh.pop %v907
    %v913 = vmul.f32 %v911, 0.5
    %v914 = vmul.f32 %v912, 0.5
    %v915 = vadd.f32 %v913, 0.5
    %v916 = vadd.f32 %v914, 0.5
    %v917 = vmul.f32 %v915, %v857
    %919 = vrot.lane.b32.xlu0 %v912, 64
    %v920 = vpop.permute.xlu0 %919
    %v922 = vmul.f32 %v915, %v920
    %924 = vrot.lane.b32.xlu0 %v922, 64
    %v925 = vpop.permute.xlu0 %924
    %v927 = vadd.f32 %v917, %v925
    %v928 = vtanh.pop %v927
    %930 = vrot.lane.b32.xlu0 %v928, 64
    %v931 = vpop.permute.xlu0 %930
    %v933 = vmul.f32 %v916, %v931
    %v934 = vpack.c.bf16 %v933, %v933
    %v935 = vld [vmem:[#allocation2 + $0x80] sm:$0xff]
    %v936 = vld [vmem:[#allocation2 + $0x88] sm:$0xff]
    %v938 = vsel %vm361, %v934, 0
    %940 = vmatprep.subr.bf16.mxu0 %v346
    %941 = vmatpush1.bf16.msra.mxu0 %v345
    %942 = vmatprep.subr.bf16.mxu0 %v348
    %943 = vmatpush1.bf16.msra.mxu0 %v347
    %944 = vmatprep.subr.bf16.mxu0 %v350
    %945 = vmatpush1.bf16.msra.mxu0 %v349
    %946 = vmatprep.subr.bf16.mxu0 %v352
    %947 = vmatpush1.bf16.msra.mxu0 %v351
    %948 = vmatprep.subr.bf16.mxu0 0
    %949 = vmatpush1.bf16.msra.mxu0 0
    %950 = vmatprep.subr.bf16.mxu0 0
    %951 = vmatpush1.bf16.msra.mxu0 0
    %952 = vmatprep.subr.bf16.mxu0 0
    %953 = vmatpush1.bf16.msra.mxu0 0
    %954 = vmatprep.subr.bf16.mxu0 0
    %955 = vmatpush1.bf16.msra.mxu0 0
    %956 = vmatprep.subr.bf16.mxu0 0
    %957 = vmatpush1.bf16.msra.mxu0 0
    %958 = vmatprep.subr.bf16.mxu0 0
    %959 = vmatpush1.bf16.msra.mxu0 0
    %960 = vmatprep.subr.bf16.mxu0 0
    %961 = vmatpush1.bf16.msra.mxu0 0
    %962 = vmatprep.subr.bf16.mxu0 0
    %963 = vmatpush1.bf16.msra.mxu0 0
    %964 = vmatprep.subr.bf16.mxu0 0
    %965 = vmatpush1.bf16.msra.mxu0 0
    %966 = vmatprep.subr.bf16.mxu0 0
    %967 = vmatpush1.bf16.msra.mxu0 0
    %968 = vmatprep.subr.bf16.mxu0 0
    %969 = vmatpush1.bf16.msra.mxu0 0
    %970 = vmatprep.subr.bf16.mxu0 0
    %971 = vmatpush1.bf16.msra.mxu0 0
    %972 = vmatprep.mubr.bf16.mxu0 0
    %973 = vmatmul.mubr.bf16.gmra.mrb[0].mxu0 %v938
    %v974 = vpop.f32.mrb[0].mxu0
    %v975 = vadd.f32 %v935, %v974
    %v976 = vpop.f32.mrb[0].mxu0
    %v977 = vadd.f32 %v936, %v976
    %v978 = vpop.f32.mrb[0].mxu0
    %v979 = vpop.f32.mrb[0].mxu0
    %980 = vdwg.mxu0
    %v981 = vtanh.pop %v975
    %v982 = vtanh.pop %v977
    %v983 = vmul.f32 %v981, 0.5
    %v984 = vmul.f32 %v982, 0.5
    %v985 = vadd.f32 %v983, 0.5
    %v986 = vadd.f32 %v984, 0.5
    %v987 = vmul.f32 %v985, %v927
    %989 = vrot.lane.b32.xlu0 %v982, 64
    %v990 = vpop.permute.xlu0 %989
    %v992 = vmul.f32 %v985, %v990
    %994 = vrot.lane.b32.xlu0 %v992, 64
    %v995 = vpop.permute.xlu0 %994
    %v997 = vadd.f32 %v987, %v995
    %v998 = vtanh.pop %v997
    %1000 = vrot.lane.b32.xlu0 %v998, 64
    %v1001 = vpop.permute.xlu0 %1000
    %v1003 = vmul.f32 %v986, %v1001
    %v1004 = vsel %vm433, %v933, %v1003
    %1006 = vrot.lane.b32.xlu0 %v927, 64
    %v1007 = vpop.permute.xlu0 %1006
    %1010 = vrot.lane.b32.xlu0 %v997, 64
    %v1011 = vpop.permute.xlu0 %1010
    %v1013 = vsel %vm433, %v1007, %v1011
    %v1014 = vld [vmem:[#allocation8 + $0xc0] sm:$0xf]
    %v1015 = vld [vmem:[#allocation8 + $0xc8] sm:$0xf]
    %v1016 = vld [vmem:[#allocation8 + $0xd0] sm:$0xf]
    %v1017 = vld [vmem:[#allocation8 + $0xd8] sm:$0xf]
    %v1018 = vld [vmem:[#allocation8 + $0xe0] sm:$0xf]
    %v1019 = vld [vmem:[#allocation8 + $0xe8] sm:$0xf]
    %v1020 = vld [vmem:[#allocation8 + $0xf0] sm:$0xf]
    %v1021 = vld [vmem:[#allocation8 + $0xf8] sm:$0xf]
    %v1022 = vld [vmem:[%s3 + $0x1] sm:$0x1]
    %v1023 = vpack.c.bf16 %v1004, %v1004
    %v1024 = vlaneseq
    %v1025 = vshrl.u32 %v1024, 7
    %v1026 = vsub.s32 0, %v1025
    %v1027 = vrot.slane %v1022, %v1026
    %v1036 = vunpack.c.l.b16 %v1014
    %v1037 = vunpack.c.l.b16 %v1015
    %v1038 = vunpack.c.l.b16 %v1016
    %v1039 = vunpack.c.l.b16 %v1017
    %v1040 = vunpack.c.l.b16 %v1018
    %v1041 = vunpack.c.l.b16 %v1019
    %v1042 = vunpack.c.l.b16 %v1020
    %v1043 = vunpack.c.l.b16 %v1021
    %v1044 = vpack.c.b16 %v1037, %v1036
    %v1045 = vpack.c.b16 %v1039, %v1038
    %v1046 = vpack.c.b16 %v1041, %v1040
    %v1047 = vpack.c.b16 %v1043, %v1042
    %v1053 = vsel %vm361, %v1023, 0
    %1055 = vmatprep.subr.bf16.mxu0 0
    %1056 = vmatpush1.bf16.msra.mxu0 %v1044
    %1057 = vmatprep.subr.bf16.mxu0 0
    %1058 = vmatpush1.bf16.msra.mxu0 %v1045
    %1059 = vmatprep.subr.bf16.mxu0 0
    %1060 = vmatpush1.bf16.msra.mxu0 %v1046
    %1061 = vmatprep.subr.bf16.mxu0 0
    %1062 = vmatpush1.bf16.msra.mxu0 %v1047
    %1063 = vmatprep.subr.bf16.mxu0 0
    %1064 = vmatpush1.bf16.msra.mxu0 0
    %1065 = vmatprep.subr.bf16.mxu0 0
    %1066 = vmatpush1.bf16.msra.mxu0 0
    %1067 = vmatprep.subr.bf16.mxu0 0
    %1068 = vmatpush1.bf16.msra.mxu0 0
    %1069 = vmatprep.subr.bf16.mxu0 0
    %1070 = vmatpush1.bf16.msra.mxu0 0
    %1071 = vmatprep.subr.bf16.mxu0 0
    %1072 = vmatpush1.bf16.msra.mxu0 0
    %1073 = vmatprep.subr.bf16.mxu0 0
    %1074 = vmatpush1.bf16.msra.mxu0 0
    %1075 = vmatprep.subr.bf16.mxu0 0
    %1076 = vmatpush1.bf16.msra.mxu0 0
    %1077 = vmatprep.subr.bf16.mxu0 0
    %1078 = vmatpush1.bf16.msra.mxu0 0
    %1079 = vmatprep.subr.bf16.mxu0 0
    %1080 = vmatpush1.bf16.msra.mxu0 0
    %1081 = vmatprep.subr.bf16.mxu0 0
    %1082 = vmatpush1.bf16.msra.mxu0 0
    %1083 = vmatprep.subr.bf16.mxu0 0
    %1084 = vmatpush1.bf16.msra.mxu0 0
    %1085 = vmatprep.subr.bf16.mxu0 0
    %1086 = vmatpush1.bf16.msra.mxu0 0
    %1087 = vmatprep.mubr.bf16.mxu0 0
    %1088 = vmatmul.mubr.bf16.gmra.mrb[0].mxu0 %v1053
    %v1089 = vpop.f32.mrb[0].mxu0
    %v1090 = vadd.f32 %v1027, %v1089
    %v1091 = vpop.f32.mrb[0].mxu0
    %v1092 = vpop.f32.mrb[0].mxu0
    %v1093 = vpop.f32.mrb[0].mxu0
    %1094 = vdwg.mxu0
    %1095 = vst [vmem:[#allocation9] sm:$0xff] %v1090
    %1096 = vst.msk [vmem:[#allocation10] sm:$0xff] %vm361, %v1004
    %s1097 = scalar_lea.vmem [#allocation10], 8
    %1098 = vst.msk [vmem:[%s1097] sm:$0xff] %vm361, %v1013
    // Predicated region
    $region30: #{tpu_custom_call.1} parent=1 // pred_check
      _
    $region31: #{tpu_custom_call.1} parent=1 // pred_check_branch
      %1100 = sbr.rel (0) target = $region33
    $region32: #{tpu_custom_call.1} parent=1 // pred_region
      %s1102 = ssub.s32 128, 128
      %1103 = vsyncadd [#allocation5], %s1102
      %s1105 = sshll.u32 [#allocation9], 4
      %s1106 = int_to_ptr.vmem [resolvable:$true] %s1105
      %1108 = dma.vmem_to_hbm [thread:$0]  %s1106, 128, %s4, [#allocation5]
    $region33: #{tpu_custom_call.1} parent=1 // pred_fallthru
      _
    // Predicated region
    $region34: #{tpu_custom_call.1} parent=1 // pred_check
      _
    $region35: #{tpu_custom_call.1} parent=1 // pred_check_branch
      %1110 = sbr.rel (0) target = $region37
    $region36: #{tpu_custom_call.1} parent=1 // pred_region
      %s1112 = ssub.s32 256, 256
      %1113 = vsyncadd [#allocation11], %s1112
      %s1114 = sshll.u32 [#allocation10], 4
      %s1115 = int_to_ptr.vmem [resolvable:$true] %s1114
      %1120 = dma.vmem_to_hbm [thread:$0]  %s1115, 256, %s5, [#allocation11], 128, 128, 8
    $region37: #{tpu_custom_call.1} parent=1 // pred_fallthru
      _
    // Predicated region
    $region38: #{tpu_custom_call.1} parent=1 // pred_check
      _
    $region39: #{tpu_custom_call.1} parent=1 // pred_check_branch
      %1122 = sbr.rel (0) target = $region41
    $region40: #{tpu_custom_call.1} parent=1 // pred_region
      %1123 = dma.done [#allocation5], 128
    $region41: #{tpu_custom_call.1} parent=1 // pred_fallthru
      _
    // Predicated region
    $region42: #{tpu_custom_call.1} parent=1 // pred_check
      _
    $region43: #{tpu_custom_call.1} parent=1 // pred_check_branch
      %1125 = sbr.rel (0) target = $region45
    $region44: #{tpu_custom_call.1} parent=1 // pred_region
      %1126 = dma.done [#allocation11], 256
    $region45: #{tpu_custom_call.1} parent=1 // pred_fallthru
      _
    %1127 = vsyncpa [#allocation4], 1
    %1128 = vsyncpa [#allocation7], 1
    %1129 = vsyncpa [#allocation5], 1
    %1130 = vsyncpa [#allocation11], 1

</llo_original>
